<compile_context>
chip_gen: v7x
topology: tpu7x:2x2x1
jax: 0.10.0
libtpu: 0.0.40
codegen_flags: <defaults>
</compile_context>

<pallas_src>
import jax
import jax.numpy as jnp
from jax.experimental import pallas as pl
from jax.experimental.pallas import tpu as pltpu

IN_DIM = 28 * 28    # 784
IN_PAD = 896        # 7 * 128, lane-dense padded input width
HID_DIM = 512
OUT_DIM = 10
OUT_PAD = 128       # lane-dense padded output width


def _round_up(n, m):
    return ((n + m - 1) // m) * m


def mlp_kernel(x_ref, w1_ref, b1_ref, w2_ref, b2_ref, o_ref):
    # x_ref:  (tm, 896)  bf16    w1_ref: (896, 512) bf16   b1_ref: (1, 512) f32
    # w2_ref: (512, 128) bf16    b2_ref: (1, 128)   f32    o_ref:  (tm, 128)

    # fc1 + ReLU (bf16 MXU matmul, f32 accumulate). Padded x columns / W1 rows are
    # zeros so they contribute nothing.
    h = jnp.dot(x_ref[...], w1_ref[...], preferred_element_type=jnp.float32)
    h = jnp.maximum(h + b1_ref[...], 0.0)

    # fc2 over padded (128) output lanes; padded columns get bias -1e30 so they
    # contribute exp(-inf) = 0 to the softmax normalizer.
    logits = jnp.dot(h.astype(jnp.bfloat16), w2_ref[...],
                     preferred_element_type=jnp.float32) + b2_ref[...]

    # LogSoftmax over dim=1 (numerically stable), computed over all 128 lanes in f32.
    m = jnp.max(logits, axis=-1, keepdims=True)
    shifted = logits - m
    lse = jnp.log(jnp.sum(jnp.exp(shifted), axis=-1, keepdims=True))
    o_ref[...] = (shifted - lse).astype(o_ref.dtype)


def prepare_params(w1, b1, w2, b2):
    """One-time parameter prep (cast + pad). Call once, reuse the result across calls.

    w1: (784, 512), b1: (512,), w2: (512, 10), b2: (10,) -- torch weights transposed
    to (in_features, out_features).
    """
    # W1 padded along the input dim to 896 rows (zeros), bf16 for the MXU.
    w1_p = jnp.zeros((IN_PAD, HID_DIM), jnp.bfloat16).at[:IN_DIM, :].set(
        w1.astype(jnp.bfloat16))
    b1_2d = b1.reshape(1, HID_DIM).astype(jnp.float32)
    # W2 padded to 128 output columns: zero weights, -1e30 bias on the padding.
    # NOTE: b2_p must stay f32 (-1e30 overflows bf16).
    w2_p = jnp.zeros((HID_DIM, OUT_PAD), jnp.bfloat16).at[:, :OUT_DIM].set(
        w2.astype(jnp.bfloat16))
    b2_p = jnp.full((1, OUT_PAD), -1e30, jnp.float32).at[:, :OUT_DIM].set(
        b2.astype(jnp.float32))
    return w1_p, b1_2d, w2_p, b2_p


def _choose_tile(B, tm_max):
    """Pick a batch tile that (a) minimizes zero-pad rows, (b) caps at tm_max, and
    (c) gives >= 2 grid steps for B >= 256 so both v7x TensorCores are used."""
    nt = pl.cdiv(B, tm_max)
    if B >= 256:
        nt = max(nt, 2)
    tm_eff = _round_up(pl.cdiv(B, nt), 16)   # sublane-aligned
    Bp = _round_up(B, tm_eff)
    return tm_eff, Bp


def mlp_forward(x, params, *, tm_max=512, out_dtype=jnp.float32):
    """x: (B, 1, 28, 28) float32 (NCHW, like the torch module).
    params: output of prepare_params(). Returns (B, 10) log-probs in out_dtype."""
    w1_p, b1_2d, w2_p, b2_p = params

    B = x.shape[0]
    x2d = x.reshape(B, -1).astype(jnp.bfloat16)     # torch: x.view(batch_size, -1)
    assert x2d.shape[1] == IN_DIM

    tm_eff, Bp = _choose_tile(B, tm_max)
    # Zero-pad batch rows to Bp and feature columns to 896 in one op.
    x2d = jnp.pad(x2d, ((0, Bp - B), (0, IN_PAD - IN_DIM)))

    resident = dict(pipeline_mode=pl.Buffered(1))   # constant index_map -> single buffer
    grid = (Bp // tm_eff,)

    out = pl.pallas_call(
        mlp_kernel,
        out_shape=jax.ShapeDtypeStruct((Bp, OUT_PAD), out_dtype),
        grid_spec=pltpu.PrefetchScalarGridSpec(
            num_scalar_prefetch=0,
            grid=grid,
            in_specs=[
                pl.BlockSpec((tm_eff, IN_PAD), lambda i: (i, 0)),                # x tile
                pl.BlockSpec((IN_PAD, HID_DIM), lambda i: (0, 0), **resident),   # W1 (padded)
                pl.BlockSpec((1, HID_DIM), lambda i: (0, 0), **resident),        # b1
                pl.BlockSpec((HID_DIM, OUT_PAD), lambda i: (0, 0), **resident),  # W2 (padded)
                pl.BlockSpec((1, OUT_PAD), lambda i: (0, 0), **resident),        # b2 (padded)
            ],
            out_specs=pl.BlockSpec((tm_eff, OUT_PAD), lambda i: (i, 0)),
        ),
        compiler_params=pltpu.CompilerParams(
            dimension_semantics=("parallel",),       # megacore-shardable batch axis
            vmem_limit_bytes=48 * 1024 * 1024,
        ),
    )(x2d, w1_p, b1_2d, w2_p, b2_p)

    return out[:B, :OUT_DIM]


def init_params(key):
    """Deterministic init matching torch.nn.Linear's default U(-1/sqrt(fan_in), 1/sqrt(fan_in))."""
    k1, k2, k3, k4 = jax.random.split(key, 4)
    bound1 = 1.0 / (IN_DIM ** 0.5)
    bound2 = 1.0 / (HID_DIM ** 0.5)
    # stored as (in_features, out_features) = transpose of torch's weight layout
    w1 = jax.random.uniform(k1, (IN_DIM, HID_DIM), jnp.float32, -bound1, bound1)
    b1 = jax.random.uniform(k2, (HID_DIM,), jnp.float32, -bound1, bound1)
    w2 = jax.random.uniform(k3, (HID_DIM, OUT_DIM), jnp.float32, -bound2, bound2)
    b2 = jax.random.uniform(k4, (OUT_DIM,), jnp.float32, -bound2, bound2)
    return w1, b1, w2, b2


def reference_forward(x, w1, b1, w2, b2):
    x2d = x.reshape(x.shape[0], -1)
    h = jnp.maximum(x2d @ w1 + b1, 0.0)
    logits = h @ w2 + b2
    return jax.nn.log_softmax(logits, axis=1)


if __name__ == "__main__":
    key = jax.random.PRNGKey(0)
    kx, kp = jax.random.split(key)

    # Small batch consistent with the module's expected MNIST input (B, 1, 28, 28).
    B = 8
    x = jax.random.normal(kx, (B, 1, 28, 28), jnp.float32)
    w1, b1, w2, b2 = init_params(kp)

    # One-time weight prep (hoisted out of the forward path).
    params = prepare_params(w1, b1, w2, b2)

    out = mlp_forward(x, params)
    out = jax.block_until_ready(out)

    ref = reference_forward(x, w1, b1, w2, b2)
    assert out.shape == (B, OUT_DIM)
    # bf16 matmuls with f32 accumulation -> loosened tolerance vs the f32 reference.
    assert jnp.allclose(out, ref, atol=5e-2, rtol=5e-2), "mismatch vs JAX reference"
    # rows must still be valid log-probabilities (padding handled correctly)
    assert jnp.allclose(jax.nn.logsumexp(out, axis=1), 0.0, atol=1e-3)

    print("KERNEL_OK")
</pallas_src>

<mosaic_0001>
module attributes {stable_mosaic.version = 11 : i64} {
  func.func @mlp_kernel(%arg0: i32, %arg1: memref<16x896xbf16, #tpu.memory_space<vmem>>, %arg2: memref<896x512xbf16, #tpu.memory_space<vmem>>, %arg3: memref<1x512xf32, #tpu.memory_space<vmem>>, %arg4: memref<512x128xbf16, #tpu.memory_space<vmem>>, %arg5: memref<1x128xf32, #tpu.memory_space<vmem>>, %arg6: memref<16x128xf32, #tpu.memory_space<vmem>>) attributes {dimension_semantics = [#tpu.dimension_semantics<parallel>], iteration_bounds = array<i64: 1>, scalar_prefetch = 0 : i64, scratch_operands = 0 : i64, tpu.core_type = #tpu.core_type<tc>, window_params = [{transform_indices = @transform_0, window_bounds = array<i64: 16, 896>}, {pipeline_mode = #tpu.pipeline_mode<synchronous>, transform_indices = @transform_1, window_bounds = array<i64: 896, 512>}, {pipeline_mode = #tpu.pipeline_mode<synchronous>, transform_indices = @transform_2, window_bounds = array<i64: 1, 512>}, {pipeline_mode = #tpu.pipeline_mode<synchronous>, transform_indices = @transform_3, window_bounds = array<i64: 512, 128>}, {pipeline_mode = #tpu.pipeline_mode<synchronous>, transform_indices = @transform_4, window_bounds = array<i64: 1, 128>}, {transform_indices = @transform_5, window_bounds = array<i64: 16, 128>}]} {
    %c0 = arith.constant 0 : index
    %c0_0 = arith.constant 0 : index
    %0 = vector.load %arg1[%c0, %c0_0] : memref<16x896xbf16, #tpu.memory_space<vmem>>, vector<16x896xbf16>
    %c0_1 = arith.constant 0 : index
    %c0_2 = arith.constant 0 : index
    %1 = vector.load %arg2[%c0_1, %c0_2] : memref<896x512xbf16, #tpu.memory_space<vmem>>, vector<896x512xbf16>
    %cst = arith.constant dense<0.000000e+00> : vector<16x512xf32>
    %2 = tpu.matmul %0, %1, %cst {dimension_numbers = #tpu.dot_dimension_numbers<[1], [0], [0], [1], [0, 0, 1, 1], [], []>} : vector<16x896xbf16>, vector<896x512xbf16>, vector<16x512xf32> -> vector<16x512xf32>
    %c0_3 = arith.constant 0 : index
    %c0_4 = arith.constant 0 : index
    %3 = vector.load %arg3[%c0_3, %c0_4] : memref<1x512xf32, #tpu.memory_space<vmem>>, vector<1x512xf32>
    %4 = vector.broadcast %3 : vector<1x512xf32> to vector<16x512xf32>
    %5 = arith.addf %2, %4 : vector<16x512xf32>
    %cst_5 = arith.constant 0.000000e+00 : f32
    %6 = vector.broadcast %cst_5 : f32 to vector<16x512xf32>
    %7 = arith.maximumf %5, %6 : vector<16x512xf32>
    %8 = arith.truncf %7 : vector<16x512xf32> to vector<16x512xbf16>
    %c0_6 = arith.constant 0 : index
    %c0_7 = arith.constant 0 : index
    %9 = vector.load %arg4[%c0_6, %c0_7] : memref<512x128xbf16, #tpu.memory_space<vmem>>, vector<512x128xbf16>
    %cst_8 = arith.constant dense<0.000000e+00> : vector<16x128xf32>
    %10 = tpu.matmul %8, %9, %cst_8 {dimension_numbers = #tpu.dot_dimension_numbers<[1], [0], [0], [1], [0, 0, 1, 1], [], []>} : vector<16x512xbf16>, vector<512x128xbf16>, vector<16x128xf32> -> vector<16x128xf32>
    %c0_9 = arith.constant 0 : index
    %c0_10 = arith.constant 0 : index
    %11 = vector.load %arg5[%c0_9, %c0_10] : memref<1x128xf32, #tpu.memory_space<vmem>>, vector<1x128xf32>
    %12 = vector.broadcast %11 : vector<1x128xf32> to vector<16x128xf32>
    %13 = arith.addf %10, %12 : vector<16x128xf32>
    %cst_11 = arith.constant dense<0xFF800000> : vector<16xf32>
    %14 = vector.multi_reduction <maximumf>, %13, %cst_11 [1] : vector<16x128xf32> to vector<16xf32>
    %15 = vector.shape_cast %14 : vector<16xf32> to vector<16x1xf32>
    %16 = vector.broadcast %15 : vector<16x1xf32> to vector<16x128xf32>
    %17 = arith.subf %13, %16 : vector<16x128xf32>
    %18 = math.exp %17 : vector<16x128xf32>
    %cst_12 = arith.constant dense<0.000000e+00> : vector<16xf32>
    %19 = vector.multi_reduction <add>, %18, %cst_12 [1] : vector<16x128xf32> to vector<16xf32>
    %20 = vector.shape_cast %19 : vector<16xf32> to vector<16x1xf32>
    %21 = math.log %20 : vector<16x1xf32>
    %22 = vector.broadcast %21 : vector<16x1xf32> to vector<16x128xf32>
    %23 = arith.subf %17, %22 : vector<16x128xf32>
    %c0_13 = arith.constant 0 : index
    %c0_14 = arith.constant 0 : index
    %24 = vector.load %arg6[%c0_13, %c0_14] : memref<16x128xf32, #tpu.memory_space<vmem>>, vector<16x128xf32>
    tpu.vector_store %arg6[%c0_13, %c0_14], %23 {strides = array<i32>} : memref<16x128xf32, #tpu.memory_space<vmem>>, vector<16x128xf32>,
    return
  }
  func.func @transform_0(%arg0: i32) -> (i32, i32) {
    %c0_i32 = arith.constant 0 : i32
    %c0_i32_0 = arith.constant 0 : i32
    return %arg0, %c0_i32 : i32, i32
  }
  func.func @transform_1(%arg0: i32) -> (i32, i32) {
    %c0_i32 = arith.constant 0 : i32
    %c0_i32_0 = arith.constant 0 : i32
    %c0_i32_1 = arith.constant 0 : i32
    return %c0_i32, %c0_i32_0 : i32, i32
  }
  func.func @transform_2(%arg0: i32) -> (i32, i32) {
    %c0_i32 = arith.constant 0 : i32
    %c0_i32_0 = arith.constant 0 : i32
    %c0_i32_1 = arith.constant 0 : i32
    return %c0_i32, %c0_i32_0 : i32, i32
  }
  func.func @transform_3(%arg0: i32) -> (i32, i32) {
    %c0_i32 = arith.constant 0 : i32
    %c0_i32_0 = arith.constant 0 : i32
    %c0_i32_1 = arith.constant 0 : i32
    return %c0_i32, %c0_i32_0 : i32, i32
  }
  func.func @transform_4(%arg0: i32) -> (i32, i32) {
    %c0_i32 = arith.constant 0 : i32
    %c0_i32_0 = arith.constant 0 : i32
    %c0_i32_1 = arith.constant 0 : i32
    return %c0_i32, %c0_i32_0 : i32, i32
  }
  func.func @transform_5(%arg0: i32) -> (i32, i32) {
    %c0_i32 = arith.constant 0 : i32
    %c0_i32_0 = arith.constant 0 : i32
    return %arg0, %c0_i32 : i32, i32
  }
}

</mosaic_0001>

<llo_original>
// kernel: tpu_custom_call.1
$region0: #{tpu_custom_call.1}
  #allocation0 [shape = 'u32[]', space=smem, size = 0x4, offset = 0x4, fixed_abs, tag = 'smem constant byte address 0x4 - core index']
  #allocation1 [shape = 'u32[144,128]{1,0:T(1,128)}', space=vmem, size = 0x12000, scoped, tag = 'internal scratch']
  %s0 = inlined_call_operand.hbm [shape: bf16[16,896], index: 0, kind: input, shape index: {}]
  %s1 = inlined_call_operand.hbm [shape: bf16[896,512], index: 1, kind: input, shape index: {}]
  %s2 = inlined_call_operand.vmem [shape: f32[1,512], index: 2, kind: input, shape index: {}]
  %s3 = inlined_call_operand.hbm [shape: bf16[512,128], index: 3, kind: input, shape index: {}]
  %s4 = inlined_call_operand.vmem [shape: f32[1,128], index: 4, kind: input, shape index: {}]
  %s5 = inlined_call_operand.hbm [shape: f32[16,128], index: 5, kind: output, shape index: {}]
  %s6 = sld [smem:[#allocation0]]
  $region42: #{tpu_custom_call.1} parent=0
    _
  %s8 = ssub.s32 1, %s6
  %s9 = scalar_select 0, %s8, %s6
  $region1: #{tpu_custom_call.1} parent=0
    #allocation2 [shape = 'u8[28672]{0}', space=vmem, size = 0x7000, scoped, tag = 'input window, operand 0, single buffered']
    #allocation3 [shape = 's32[1]{0}', space=sflag, size = 0x4, scoped, tag = 'scoped memory for tpu_custom_call.1']
    #allocation4 [shape = 's32[1]{0}', space=sflag, size = 0x4, scoped, tag = 'scoped memory for tpu_custom_call.1']
    #allocation5 [shape = 'u8[917504]{0}', space=vmem, size = 0xe0000, scoped, tag = 'input window, operand 1, single buffered']
    #allocation6 [shape = 's32[1]{0}', space=sflag, size = 0x4, scoped, tag = 'scoped memory for tpu_custom_call.1']
    #allocation7 [shape = 'u8[131072]{0}', space=vmem, size = 0x20000, scoped, tag = 'input window, operand 3, single buffered']
    #allocation8 [shape = 'u8[8192]{0}', space=vmem, size = 0x2000, scoped, tag = 'output window, operand 0, single buffered']
    %10 = vsyncpa [#allocation3], 0
    %11 = vsyncpa [#allocation6], 0
    %12 = vsyncpa [#allocation4], 0
    // Predicated region
    $region2: #{tpu_custom_call.1} parent=1 // pred_check
      _
    $region3: #{tpu_custom_call.1} parent=1 // pred_check_branch
      %14 = sbr.rel (0) target = $region5
    $region4: #{tpu_custom_call.1} parent=1 // pred_region
      %s16 = ssub.s32 896, 896
      %17 = vsyncadd [#allocation3], %s16
      %s18 = sshll.u32 [#allocation2], 4
      %s19 = int_to_ptr.vmem [resolvable:$true] %s18
      %24 = dma.hbm_to_vmem [thread:$0]  %s0, 896, %s19, [#allocation3], 448, 448, 28
    $region5: #{tpu_custom_call.1} parent=1 // pred_fallthru
      _
    // Predicated region
    $region6: #{tpu_custom_call.1} parent=1 // pred_check
      _
    $region7: #{tpu_custom_call.1} parent=1 // pred_check_branch
      %26 = sbr.rel (0) target = $region9
    $region8: #{tpu_custom_call.1} parent=1 // pred_region
      %s28 = ssub.s32 28672, 28672
      %29 = vsyncadd [#allocation6], %s28
      %s30 = sshll.u32 [#allocation5], 4
      %s31 = int_to_ptr.vmem [resolvable:$true] %s30
      %36 = dma.hbm_to_vmem [thread:$0]  %s1, 28672, %s31, [#allocation6], 256, 256, 16
    $region9: #{tpu_custom_call.1} parent=1 // pred_fallthru
      _
    // Predicated region
    $region10: #{tpu_custom_call.1} parent=1 // pred_check
      _
    $region11: #{tpu_custom_call.1} parent=1 // pred_check_branch
      %38 = sbr.rel (0) target = $region13
    $region12: #{tpu_custom_call.1} parent=1 // pred_region
      _
    $region13: #{tpu_custom_call.1} parent=1 // pred_fallthru
      _
    // Predicated region
    $region14: #{tpu_custom_call.1} parent=1 // pred_check
      _
    $region15: #{tpu_custom_call.1} parent=1 // pred_check_branch
      %40 = sbr.rel (0) target = $region17
    $region16: #{tpu_custom_call.1} parent=1 // pred_region
      %s42 = ssub.s32 4096, 4096
      %43 = vsyncadd [#allocation6], %s42
      %s44 = sshll.u32 [#allocation7], 4
      %s45 = int_to_ptr.vmem [resolvable:$true] %s44
      %50 = dma.hbm_to_vmem [thread:$0]  %s3, 4096, %s45, [#allocation6], 64, 64, 4
    $region17: #{tpu_custom_call.1} parent=1 // pred_fallthru
      _
    // Predicated region
    $region18: #{tpu_custom_call.1} parent=1 // pred_check
      _
    $region19: #{tpu_custom_call.1} parent=1 // pred_check_branch
      %52 = sbr.rel (0) target = $region21
    $region20: #{tpu_custom_call.1} parent=1 // pred_region
      _
    $region21: #{tpu_custom_call.1} parent=1 // pred_fallthru
      _
    // Predicated region
    $region22: #{tpu_custom_call.1} parent=1 // pred_check
      _
    $region23: #{tpu_custom_call.1} parent=1 // pred_check_branch
      %54 = sbr.rel (0) target = $region25
    $region24: #{tpu_custom_call.1} parent=1 // pred_region
      %55 = dma.done [#allocation3], 896
    $region25: #{tpu_custom_call.1} parent=1 // pred_fallthru
      _
    // Predicated region
    $region26: #{tpu_custom_call.1} parent=1 // pred_check
      _
    $region27: #{tpu_custom_call.1} parent=1 // pred_check_branch
      %57 = sbr.rel (0) target = $region29
    $region28: #{tpu_custom_call.1} parent=1 // pred_region
      %58 = dma.done [#allocation6], 28672
    $region29: #{tpu_custom_call.1} parent=1 // pred_fallthru
      _
    // Predicated region
    $region30: #{tpu_custom_call.1} parent=1 // pred_check
      _
    $region31: #{tpu_custom_call.1} parent=1 // pred_check_branch
      %60 = sbr.rel (0) target = $region33
    $region32: #{tpu_custom_call.1} parent=1 // pred_region
      %61 = dma.done [#allocation6], 4096
    $region33: #{tpu_custom_call.1} parent=1 // pred_fallthru
      _
    %v63 = vld [vmem:[#allocation2] sm:$0xff]
    %v64 = vld [vmem:[#allocation2 + $0x8] sm:$0xff]
    %v65 = vld [vmem:[#allocation2 + $0x10] sm:$0xff]
    %v66 = vld [vmem:[#allocation2 + $0x18] sm:$0xf]
    %v67 = vld [vmem:[#allocation2 + $0x1c] sm:$0xff]
    %v68 = vld [vmem:[#allocation2 + $0x24] sm:$0xff]
    %v69 = vld [vmem:[#allocation2 + $0x2c] sm:$0xff]
    %v70 = vld [vmem:[#allocation2 + $0x34] sm:$0xf]
    %v71 = vld [vmem:[#allocation5] sm:$0xff]
    %v72 = vld [vmem:[#allocation5 + $0x8] sm:$0xff]
    %v73 = vld [vmem:[#allocation5 + $0x10] sm:$0xff]
    %v74 = vld [vmem:[#allocation5 + $0x18] sm:$0xff]
    %v75 = vld [vmem:[#allocation5 + $0x20] sm:$0xff]
    %v76 = vld [vmem:[#allocation5 + $0x28] sm:$0xff]
    %v77 = vld [vmem:[#allocation5 + $0x30] sm:$0xff]
    %v78 = vld [vmem:[#allocation5 + $0x38] sm:$0xff]
    %v79 = vld [vmem:[#allocation5 + $0x40] sm:$0xff]
    %v80 = vld [vmem:[#allocation5 + $0x48] sm:$0xff]
    %v81 = vld [vmem:[#allocation5 + $0x50] sm:$0xff]
    %v82 = vld [vmem:[#allocation5 + $0x58] sm:$0xff]
    %v83 = vld [vmem:[#allocation5 + $0x60] sm:$0xff]
    %v84 = vld [vmem:[#allocation5 + $0x68] sm:$0xff]
    %v85 = vld [vmem:[#allocation5 + $0x70] sm:$0xff]
    %v86 = vld [vmem:[#allocation5 + $0x78] sm:$0xff]
    %v87 = vld [vmem:[#allocation5 + $0x80] sm:$0xff]
    %v88 = vld [vmem:[#allocation5 + $0x88] sm:$0xff]
    %v89 = vld [vmem:[#allocation5 + $0x90] sm:$0xff]
    %v90 = vld [vmem:[#allocation5 + $0x98] sm:$0xff]
    %v91 = vld [vmem:[#allocation5 + $0xa0] sm:$0xff]
    %v92 = vld [vmem:[#allocation5 + $0xa8] sm:$0xff]
    %v93 = vld [vmem:[#allocation5 + $0xb0] sm:$0xff]
    %v94 = vld [vmem:[#allocation5 + $0xb8] sm:$0xff]
    %v95 = vld [vmem:[#allocation5 + $0xc0] sm:$0xff]
    %v96 = vld [vmem:[#allocation5 + $0xc8] sm:$0xff]
    %v97 = vld [vmem:[#allocation5 + $0xd0] sm:$0xff]
    %v98 = vld [vmem:[#allocation5 + $0xd8] sm:$0xff]
    %v99 = vld [vmem:[#allocation5 + $0xe0] sm:$0xff]
    %v100 = vld [vmem:[#allocation5 + $0xe8] sm:$0xff]
    %v101 = vld [vmem:[#allocation5 + $0xf0] sm:$0xff]
    %v102 = vld [vmem:[#allocation5 + $0xf8] sm:$0xff]
    %v103 = vld [vmem:[#allocation5 + $0x100] sm:$0xff]
    %v104 = vld [vmem:[#allocation5 + $0x108] sm:$0xff]
    %v105 = vld [vmem:[#allocation5 + $0x110] sm:$0xff]
    %v106 = vld [vmem:[#allocation5 + $0x118] sm:$0xff]
    %v107 = vld [vmem:[#allocation5 + $0x120] sm:$0xff]
    %v108 = vld [vmem:[#allocation5 + $0x128] sm:$0xff]
    %v109 = vld [vmem:[#allocation5 + $0x130] sm:$0xff]
    %v110 = vld [vmem:[#allocation5 + $0x138] sm:$0xff]
    %v111 = vld [vmem:[#allocation5 + $0x140] sm:$0xff]
    %v112 = vld [vmem:[#allocation5 + $0x148] sm:$0xff]
    %v113 = vld [vmem:[#allocation5 + $0x150] sm:$0xff]
    %v114 = vld [vmem:[#allocation5 + $0x158] sm:$0xff]
    %v115 = vld [vmem:[#allocation5 + $0x160] sm:$0xff]
    %v116 = vld [vmem:[#allocation5 + $0x168] sm:$0xff]
    %v117 = vld [vmem:[#allocation5 + $0x170] sm:$0xff]
    %v118 = vld [vmem:[#allocation5 + $0x178] sm:$0xff]
    %v119 = vld [vmem:[#allocation5 + $0x180] sm:$0xff]
    %v120 = vld [vmem:[#allocation5 + $0x188] sm:$0xff]
    %v121 = vld [vmem:[#allocation5 + $0x190] sm:$0xff]
    %v122 = vld [vmem:[#allocation5 + $0x198] sm:$0xff]
    %v123 = vld [vmem:[#allocation5 + $0x1a0] sm:$0xff]
    %v124 = vld [vmem:[#allocation5 + $0x1a8] sm:$0xff]
    %v125 = vld [vmem:[#allocation5 + $0x1b0] sm:$0xff]
    %v126 = vld [vmem:[#allocation5 + $0x1b8] sm:$0xff]
    %v127 = vld [vmem:[#allocation5 + $0x1c0] sm:$0xff]
    %v128 = vld [vmem:[#allocation5 + $0x1c8] sm:$0xff]
    %v129 = vld [vmem:[#allocation5 + $0x1d0] sm:$0xff]
    %v130 = vld [vmem:[#allocation5 + $0x1d8] sm:$0xff]
    %v131 = vld [vmem:[#allocation5 + $0x1e0] sm:$0xff]
    %v132 = vld [vmem:[#allocation5 + $0x1e8] sm:$0xff]
    %v133 = vld [vmem:[#allocation5 + $0x1f0] sm:$0xff]
    %v134 = vld [vmem:[#allocation5 + $0x1f8] sm:$0xff]
    %v135 = vld [vmem:[#allocation5 + $0x200] sm:$0xff]
    %v136 = vld [vmem:[#allocation5 + $0x208] sm:$0xff]
    %v137 = vld [vmem:[#allocation5 + $0x210] sm:$0xff]
    %v138 = vld [vmem:[#allocation5 + $0x218] sm:$0xff]
    %v139 = vld [vmem:[#allocation5 + $0x220] sm:$0xff]
    %v140 = vld [vmem:[#allocation5 + $0x228] sm:$0xff]
    %v141 = vld [vmem:[#allocation5 + $0x230] sm:$0xff]
    %v142 = vld [vmem:[#allocation5 + $0x238] sm:$0xff]
    %v143 = vld [vmem:[#allocation5 + $0x240] sm:$0xff]
    %v144 = vld [vmem:[#allocation5 + $0x248] sm:$0xff]
    %v145 = vld [vmem:[#allocation5 + $0x250] sm:$0xff]
    %v146 = vld [vmem:[#allocation5 + $0x258] sm:$0xff]
    %v147 = vld [vmem:[#allocation5 + $0x260] sm:$0xff]
    %v148 = vld [vmem:[#allocation5 + $0x268] sm:$0xff]
    %v149 = vld [vmem:[#allocation5 + $0x270] sm:$0xff]
    %v150 = vld [vmem:[#allocation5 + $0x278] sm:$0xff]
    %v151 = vld [vmem:[#allocation5 + $0x280] sm:$0xff]
    %v152 = vld [vmem:[#allocation5 + $0x288] sm:$0xff]
    %v153 = vld [vmem:[#allocation5 + $0x290] sm:$0xff]
    %v154 = vld [vmem:[#allocation5 + $0x298] sm:$0xff]
    %v155 = vld [vmem:[#allocation5 + $0x2a0] sm:$0xff]
    %v156 = vld [vmem:[#allocation5 + $0x2a8] sm:$0xff]
    %v157 = vld [vmem:[#allocation5 + $0x2b0] sm:$0xff]
    %v158 = vld [vmem:[#allocation5 + $0x2b8] sm:$0xff]
    %v159 = vld [vmem:[#allocation5 + $0x2c0] sm:$0xff]
    %v160 = vld [vmem:[#allocation5 + $0x2c8] sm:$0xff]
    %v161 = vld [vmem:[#allocation5 + $0x2d0] sm:$0xff]
    %v162 = vld [vmem:[#allocation5 + $0x2d8] sm:$0xff]
    %v163 = vld [vmem:[#allocation5 + $0x2e0] sm:$0xff]
    %v164 = vld [vmem:[#allocation5 + $0x2e8] sm:$0xff]
    %v165 = vld [vmem:[#allocation5 + $0x2f0] sm:$0xff]
    %v166 = vld [vmem:[#allocation5 + $0x2f8] sm:$0xff]
    %v167 = vld [vmem:[#allocation5 + $0x300] sm:$0xff]
    %v168 = vld [vmem:[#allocation5 + $0x308] sm:$0xff]
    %v169 = vld [vmem:[#allocation5 + $0x310] sm:$0xff]
    %v170 = vld [vmem:[#allocation5 + $0x318] sm:$0xff]
    %v171 = vld [vmem:[#allocation5 + $0x320] sm:$0xff]
    %v172 = vld [vmem:[#allocation5 + $0x328] sm:$0xff]
    %v173 = vld [vmem:[#allocation5 + $0x330] sm:$0xff]
    %v174 = vld [vmem:[#allocation5 + $0x338] sm:$0xff]
    %v175 = vld [vmem:[#allocation5 + $0x340] sm:$0xff]
    %v176 = vld [vmem:[#allocation5 + $0x348] sm:$0xff]
    %v177 = vld [vmem:[#allocation5 + $0x350] sm:$0xff]
    %v178 = vld [vmem:[#allocation5 + $0x358] sm:$0xff]
    %v179 = vld [vmem:[#allocation5 + $0x360] sm:$0xff]
    %v180 = vld [vmem:[#allocation5 + $0x368] sm:$0xff]
    %v181 = vld [vmem:[#allocation5 + $0x370] sm:$0xff]
    %v182 = vld [vmem:[#allocation5 + $0x378] sm:$0xff]
    %v183 = vld [vmem:[#allocation5 + $0x380] sm:$0xff]
    %v184 = vld [vmem:[#allocation5 + $0x388] sm:$0xff]
    %v185 = vld [vmem:[#allocation5 + $0x390] sm:$0xff]
    %v186 = vld [vmem:[#allocation5 + $0x398] sm:$0xff]
    %v187 = vld [vmem:[#allocation5 + $0x3a0] sm:$0xff]
    %v188 = vld [vmem:[#allocation5 + $0x3a8] sm:$0xff]
    %v189 = vld [vmem:[#allocation5 + $0x3b0] sm:$0xff]
    %v190 = vld [vmem:[#allocation5 + $0x3b8] sm:$0xff]
    %v191 = vld [vmem:[#allocation5 + $0x3c0] sm:$0xff]
    %v192 = vld [vmem:[#allocation5 + $0x3c8] sm:$0xff]
    %v193 = vld [vmem:[#allocation5 + $0x3d0] sm:$0xff]
    %v194 = vld [vmem:[#allocation5 + $0x3d8] sm:$0xff]
    %v195 = vld [vmem:[#allocation5 + $0x3e0] sm:$0xff]
    %v196 = vld [vmem:[#allocation5 + $0x3e8] sm:$0xff]
    %v197 = vld [vmem:[#allocation5 + $0x3f0] sm:$0xff]
    %v198 = vld [vmem:[#allocation5 + $0x3f8] sm:$0xff]
    %v199 = vld [vmem:[#allocation5 + $0x400] sm:$0xff]
    %v200 = vld [vmem:[#allocation5 + $0x408] sm:$0xff]
    %v201 = vld [vmem:[#allocation5 + $0x410] sm:$0xff]
    %v202 = vld [vmem:[#allocation5 + $0x418] sm:$0xff]
    %v203 = vld [vmem:[#allocation5 + $0x420] sm:$0xff]
    %v204 = vld [vmem:[#allocation5 + $0x428] sm:$0xff]
    %v205 = vld [vmem:[#allocation5 + $0x430] sm:$0xff]
    %v206 = vld [vmem:[#allocation5 + $0x438] sm:$0xff]
    %v207 = vld [vmem:[#allocation5 + $0x440] sm:$0xff]
    %v208 = vld [vmem:[#allocation5 + $0x448] sm:$0xff]
    %v209 = vld [vmem:[#allocation5 + $0x450] sm:$0xff]
    %v210 = vld [vmem:[#allocation5 + $0x458] sm:$0xff]
    %v211 = vld [vmem:[#allocation5 + $0x460] sm:$0xff]
    %v212 = vld [vmem:[#allocation5 + $0x468] sm:$0xff]
    %v213 = vld [vmem:[#allocation5 + $0x470] sm:$0xff]
    %v214 = vld [vmem:[#allocation5 + $0x478] sm:$0xff]
    %v215 = vld [vmem:[#allocation5 + $0x480] sm:$0xff]
    %v216 = vld [vmem:[#allocation5 + $0x488] sm:$0xff]
    %v217 = vld [vmem:[#allocation5 + $0x490] sm:$0xff]
    %v218 = vld [vmem:[#allocation5 + $0x498] sm:$0xff]
    %v219 = vld [vmem:[#allocation5 + $0x4a0] sm:$0xff]
    %v220 = vld [vmem:[#allocation5 + $0x4a8] sm:$0xff]
    %v221 = vld [vmem:[#allocation5 + $0x4b0] sm:$0xff]
    %v222 = vld [vmem:[#allocation5 + $0x4b8] sm:$0xff]
    %v223 = vld [vmem:[#allocation5 + $0x4c0] sm:$0xff]
    %v224 = vld [vmem:[#allocation5 + $0x4c8] sm:$0xff]
    %v225 = vld [vmem:[#allocation5 + $0x4d0] sm:$0xff]
    %v226 = vld [vmem:[#allocation5 + $0x4d8] sm:$0xff]
    %v227 = vld [vmem:[#allocation5 + $0x4e0] sm:$0xff]
    %v228 = vld [vmem:[#allocation5 + $0x4e8] sm:$0xff]
    %v229 = vld [vmem:[#allocation5 + $0x4f0] sm:$0xff]
    %v230 = vld [vmem:[#allocation5 + $0x4f8] sm:$0xff]
    %v231 = vld [vmem:[#allocation5 + $0x500] sm:$0xff]
    %v232 = vld [vmem:[#allocation5 + $0x508] sm:$0xff]
    %v233 = vld [vmem:[#allocation5 + $0x510] sm:$0xff]
    %v234 = vld [vmem:[#allocation5 + $0x518] sm:$0xff]
    %v235 = vld [vmem:[#allocation5 + $0x520] sm:$0xff]
    %v236 = vld [vmem:[#allocation5 + $0x528] sm:$0xff]
    %v237 = vld [vmem:[#allocation5 + $0x530] sm:$0xff]
    %v238 = vld [vmem:[#allocation5 + $0x538] sm:$0xff]
    %v239 = vld [vmem:[#allocation5 + $0x540] sm:$0xff]
    %v240 = vld [vmem:[#allocation5 + $0x548] sm:$0xff]
    %v241 = vld [vmem:[#allocation5 + $0x550] sm:$0xff]
    %v242 = vld [vmem:[#allocation5 + $0x558] sm:$0xff]
    %v243 = vld [vmem:[#allocation5 + $0x560] sm:$0xff]
    %v244 = vld [vmem:[#allocation5 + $0x568] sm:$0xff]
    %v245 = vld [vmem:[#allocation5 + $0x570] sm:$0xff]
    %v246 = vld [vmem:[#allocation5 + $0x578] sm:$0xff]
    %v247 = vld [vmem:[#allocation5 + $0x580] sm:$0xff]
    %v248 = vld [vmem:[#allocation5 + $0x588] sm:$0xff]
    %v249 = vld [vmem:[#allocation5 + $0x590] sm:$0xff]
    %v250 = vld [vmem:[#allocation5 + $0x598] sm:$0xff]
    %v251 = vld [vmem:[#allocation5 + $0x5a0] sm:$0xff]
    %v252 = vld [vmem:[#allocation5 + $0x5a8] sm:$0xff]
    %v253 = vld [vmem:[#allocation5 + $0x5b0] sm:$0xff]
    %v254 = vld [vmem:[#allocation5 + $0x5b8] sm:$0xff]
    %v255 = vld [vmem:[#allocation5 + $0x5c0] sm:$0xff]
    %v256 = vld [vmem:[#allocation5 + $0x5c8] sm:$0xff]
    %v257 = vld [vmem:[#allocation5 + $0x5d0] sm:$0xff]
    %v258 = vld [vmem:[#allocation5 + $0x5d8] sm:$0xff]
    %v259 = vld [vmem:[#allocation5 + $0x5e0] sm:$0xff]
    %v260 = vld [vmem:[#allocation5 + $0x5e8] sm:$0xff]
    %v261 = vld [vmem:[#allocation5 + $0x5f0] sm:$0xff]
    %v262 = vld [vmem:[#allocation5 + $0x5f8] sm:$0xff]
    %v263 = vld [vmem:[#allocation5 + $0x600] sm:$0xff]
    %v264 = vld [vmem:[#allocation5 + $0x608] sm:$0xff]
    %v265 = vld [vmem:[#allocation5 + $0x610] sm:$0xff]
    %v266 = vld [vmem:[#allocation5 + $0x618] sm:$0xff]
    %v267 = vld [vmem:[#allocation5 + $0x620] sm:$0xff]
    %v268 = vld [vmem:[#allocation5 + $0x628] sm:$0xff]
    %v269 = vld [vmem:[#allocation5 + $0x630] sm:$0xff]
    %v270 = vld [vmem:[#allocation5 + $0x638] sm:$0xff]
    %v271 = vld [vmem:[#allocation5 + $0x640] sm:$0xff]
    %v272 = vld [vmem:[#allocation5 + $0x648] sm:$0xff]
    %v273 = vld [vmem:[#allocation5 + $0x650] sm:$0xff]
    %v274 = vld [vmem:[#allocation5 + $0x658] sm:$0xff]
    %v275 = vld [vmem:[#allocation5 + $0x660] sm:$0xff]
    %v276 = vld [vmem:[#allocation5 + $0x668] sm:$0xff]
    %v277 = vld [vmem:[#allocation5 + $0x670] sm:$0xff]
    %v278 = vld [vmem:[#allocation5 + $0x678] sm:$0xff]
    %v279 = vld [vmem:[#allocation5 + $0x680] sm:$0xff]
    %v280 = vld [vmem:[#allocation5 + $0x688] sm:$0xff]
    %v281 = vld [vmem:[#allocation5 + $0x690] sm:$0xff]
    %v282 = vld [vmem:[#allocation5 + $0x698] sm:$0xff]
    %v283 = vld [vmem:[#allocation5 + $0x6a0] sm:$0xff]
    %v284 = vld [vmem:[#allocation5 + $0x6a8] sm:$0xff]
    %v285 = vld [vmem:[#allocation5 + $0x6b0] sm:$0xff]
    %v286 = vld [vmem:[#allocation5 + $0x6b8] sm:$0xff]
    %v287 = vld [vmem:[#allocation5 + $0x6c0] sm:$0xff]
    %v288 = vld [vmem:[#allocation5 + $0x6c8] sm:$0xff]
    %v289 = vld [vmem:[#allocation5 + $0x6d0] sm:$0xff]
    %v290 = vld [vmem:[#allocation5 + $0x6d8] sm:$0xff]
    %v291 = vld [vmem:[#allocation5 + $0x6e0] sm:$0xff]
    %v292 = vld [vmem:[#allocation5 + $0x6e8] sm:$0xff]
    %v293 = vld [vmem:[#allocation5 + $0x6f0] sm:$0xff]
    %v294 = vld [vmem:[#allocation5 + $0x6f8] sm:$0xff]
    %v295 = vld [vmem:[%s2] sm:$0xf]
    %v297 = vlaneseq
    %v298 = vshrl.u32 %v297, 7
    %v299 = vsub.s32 0, %v298
    %v300 = vrot.slane %v295, %v299
    %v301 = vlaneseq
    %v302 = vshrl.u32 %v301, 7
    %v303 = vsub.s32 1, %v302
    %v304 = vrot.slane %v295, %v303
    %v305 = vlaneseq
    %v306 = vshrl.u32 %v305, 7
    %v307 = vsub.s32 2, %v306
    %v308 = vrot.slane %v295, %v307
    %v309 = vlaneseq
    %v310 = vshrl.u32 %v309, 7
    %v311 = vsub.s32 3, %v310
    %v312 = vrot.slane %v295, %v311
    %v325 = vunpack.c.l.b16 %v63
    %v326 = vunpack.c.h.b16 %v63
    %v327 = vunpack.c.l.b16 %v64
    %v328 = vunpack.c.h.b16 %v64
    %v329 = vunpack.c.l.b16 %v65
    %v330 = vunpack.c.h.b16 %v65
    %v331 = vunpack.c.l.b16 %v66
    %v332 = vunpack.c.l.b16 %v67
    %v333 = vunpack.c.h.b16 %v67
    %v334 = vunpack.c.l.b16 %v68
    %v335 = vunpack.c.h.b16 %v68
    %v336 = vunpack.c.l.b16 %v69
    %v337 = vunpack.c.h.b16 %v69
    %v338 = vunpack.c.l.b16 %v70
    %v339 = vpack.c.b16 %v332, %v325
    %v340 = vpack.c.b16 %v333, %v326
    %v341 = vpack.c.b16 %v334, %v327
    %v342 = vpack.c.b16 %v335, %v328
    %v343 = vpack.c.b16 %v336, %v329
    %v344 = vpack.c.b16 %v337, %v330
    %v345 = vpack.c.b16 %v338, %v331
    %v577 = vunpack.c.l.b16 %v71
    %v578 = vunpack.c.h.b16 %v71
    %v579 = vunpack.c.l.b16 %v72
    %v580 = vunpack.c.h.b16 %v72
    %v581 = vunpack.c.l.b16 %v73
    %v582 = vunpack.c.h.b16 %v73
    %v583 = vunpack.c.l.b16 %v74
    %v584 = vunpack.c.h.b16 %v74
    %v585 = vunpack.c.l.b16 %v75
    %v586 = vunpack.c.h.b16 %v75
    %v587 = vunpack.c.l.b16 %v76
    %v588 = vunpack.c.h.b16 %v76
    %v589 = vunpack.c.l.b16 %v77
    %v590 = vunpack.c.h.b16 %v77
    %v591 = vunpack.c.l.b16 %v78
    %v592 = vunpack.c.h.b16 %v78
    %v593 = vunpack.c.l.b16 %v79
    %v594 = vunpack.c.h.b16 %v79
    %v595 = vunpack.c.l.b16 %v80
    %v596 = vunpack.c.h.b16 %v80
    %v597 = vunpack.c.l.b16 %v81
    %v598 = vunpack.c.h.b16 %v81
    %v599 = vunpack.c.l.b16 %v82
    %v600 = vunpack.c.h.b16 %v82
    %v601 = vunpack.c.l.b16 %v83
    %v602 = vunpack.c.h.b16 %v83
    %v603 = vunpack.c.l.b16 %v84
    %v604 = vunpack.c.h.b16 %v84
    %v605 = vunpack.c.l.b16 %v85
    %v606 = vunpack.c.h.b16 %v85
    %v607 = vunpack.c.l.b16 %v86
    %v608 = vunpack.c.h.b16 %v86
    %v609 = vunpack.c.l.b16 %v87
    %v610 = vunpack.c.h.b16 %v87
    %v611 = vunpack.c.l.b16 %v88
    %v612 = vunpack.c.h.b16 %v88
    %v613 = vunpack.c.l.b16 %v89
    %v614 = vunpack.c.h.b16 %v89
    %v615 = vunpack.c.l.b16 %v90
    %v616 = vunpack.c.h.b16 %v90
    %v617 = vunpack.c.l.b16 %v91
    %v618 = vunpack.c.h.b16 %v91
    %v619 = vunpack.c.l.b16 %v92
    %v620 = vunpack.c.h.b16 %v92
    %v621 = vunpack.c.l.b16 %v93
    %v622 = vunpack.c.h.b16 %v93
    %v623 = vunpack.c.l.b16 %v94
    %v624 = vunpack.c.h.b16 %v94
    %v625 = vunpack.c.l.b16 %v95
    %v626 = vunpack.c.h.b16 %v95
    %v627 = vunpack.c.l.b16 %v96
    %v628 = vunpack.c.h.b16 %v96
    %v629 = vunpack.c.l.b16 %v97
    %v630 = vunpack.c.h.b16 %v97
    %v631 = vunpack.c.l.b16 %v98
    %v632 = vunpack.c.h.b16 %v98
    %v633 = vunpack.c.l.b16 %v99
    %v634 = vunpack.c.h.b16 %v99
    %v635 = vunpack.c.l.b16 %v100
    %v636 = vunpack.c.h.b16 %v100
    %v637 = vunpack.c.l.b16 %v101
    %v638 = vunpack.c.h.b16 %v101
    %v639 = vunpack.c.l.b16 %v102
    %v640 = vunpack.c.h.b16 %v102
    %v641 = vunpack.c.l.b16 %v103
    %v642 = vunpack.c.h.b16 %v103
    %v643 = vunpack.c.l.b16 %v104
    %v644 = vunpack.c.h.b16 %v104
    %v645 = vunpack.c.l.b16 %v105
    %v646 = vunpack.c.h.b16 %v105
    %v647 = vunpack.c.l.b16 %v106
    %v648 = vunpack.c.h.b16 %v106
    %v649 = vunpack.c.l.b16 %v107
    %v650 = vunpack.c.h.b16 %v107
    %v651 = vunpack.c.l.b16 %v108
    %v652 = vunpack.c.h.b16 %v108
    %v653 = vunpack.c.l.b16 %v109
    %v654 = vunpack.c.h.b16 %v109
    %v655 = vunpack.c.l.b16 %v110
    %v656 = vunpack.c.h.b16 %v110
    %v657 = vunpack.c.l.b16 %v111
    %v658 = vunpack.c.h.b16 %v111
    %v659 = vunpack.c.l.b16 %v112
    %v660 = vunpack.c.h.b16 %v112
    %v661 = vunpack.c.l.b16 %v113
    %v662 = vunpack.c.h.b16 %v113
    %v663 = vunpack.c.l.b16 %v114
    %v664 = vunpack.c.h.b16 %v114
    %v665 = vunpack.c.l.b16 %v115
    %v666 = vunpack.c.h.b16 %v115
    %v667 = vunpack.c.l.b16 %v116
    %v668 = vunpack.c.h.b16 %v116
    %v669 = vunpack.c.l.b16 %v117
    %v670 = vunpack.c.h.b16 %v117
    %v671 = vunpack.c.l.b16 %v118
    %v672 = vunpack.c.h.b16 %v118
    %v673 = vunpack.c.l.b16 %v119
    %v674 = vunpack.c.h.b16 %v119
    %v675 = vunpack.c.l.b16 %v120
    %v676 = vunpack.c.h.b16 %v120
    %v677 = vunpack.c.l.b16 %v121
    %v678 = vunpack.c.h.b16 %v121
    %v679 = vunpack.c.l.b16 %v122
    %v680 = vunpack.c.h.b16 %v122
    %v681 = vunpack.c.l.b16 %v123
    %v682 = vunpack.c.h.b16 %v123
    %v683 = vunpack.c.l.b16 %v124
    %v684 = vunpack.c.h.b16 %v124
    %v685 = vunpack.c.l.b16 %v125
    %v686 = vunpack.c.h.b16 %v125
    %v687 = vunpack.c.l.b16 %v126
    %v688 = vunpack.c.h.b16 %v126
    %v689 = vunpack.c.l.b16 %v127
    %v690 = vunpack.c.h.b16 %v127
    %v691 = vunpack.c.l.b16 %v128
    %v692 = vunpack.c.h.b16 %v128
    %v693 = vunpack.c.l.b16 %v129
    %v694 = vunpack.c.h.b16 %v129
    %v695 = vunpack.c.l.b16 %v130
    %v696 = vunpack.c.h.b16 %v130
    %v697 = vunpack.c.l.b16 %v131
    %v698 = vunpack.c.h.b16 %v131
    %v699 = vunpack.c.l.b16 %v132
    %v700 = vunpack.c.h.b16 %v132
    %v701 = vunpack.c.l.b16 %v133
    %v702 = vunpack.c.h.b16 %v133
    %v703 = vunpack.c.l.b16 %v134
    %v704 = vunpack.c.h.b16 %v134
    %v705 = vunpack.c.l.b16 %v135
    %v706 = vunpack.c.h.b16 %v135
    %v707 = vunpack.c.l.b16 %v136
    %v708 = vunpack.c.h.b16 %v136
    %v709 = vunpack.c.l.b16 %v137
    %v710 = vunpack.c.h.b16 %v137
    %v711 = vunpack.c.l.b16 %v138
    %v712 = vunpack.c.h.b16 %v138
    %v713 = vunpack.c.l.b16 %v139
    %v714 = vunpack.c.h.b16 %v139
    %v715 = vunpack.c.l.b16 %v140
    %v716 = vunpack.c.h.b16 %v140
    %v717 = vunpack.c.l.b16 %v141
    %v718 = vunpack.c.h.b16 %v141
    %v719 = vunpack.c.l.b16 %v142
    %v720 = vunpack.c.h.b16 %v142
    %v721 = vunpack.c.l.b16 %v143
    %v722 = vunpack.c.h.b16 %v143
    %v723 = vunpack.c.l.b16 %v144
    %v724 = vunpack.c.h.b16 %v144
    %v725 = vunpack.c.l.b16 %v145
    %v726 = vunpack.c.h.b16 %v145
    %v727 = vunpack.c.l.b16 %v146
    %v728 = vunpack.c.h.b16 %v146
    %v729 = vunpack.c.l.b16 %v147
    %v730 = vunpack.c.h.b16 %v147
    %v731 = vunpack.c.l.b16 %v148
    %v732 = vunpack.c.h.b16 %v148
    %v733 = vunpack.c.l.b16 %v149
    %v734 = vunpack.c.h.b16 %v149
    %v735 = vunpack.c.l.b16 %v150
    %v736 = vunpack.c.h.b16 %v150
    %v737 = vunpack.c.l.b16 %v151
    %v738 = vunpack.c.h.b16 %v151
    %v739 = vunpack.c.l.b16 %v152
    %v740 = vunpack.c.h.b16 %v152
    %v741 = vunpack.c.l.b16 %v153
    %v742 = vunpack.c.h.b16 %v153
    %v743 = vunpack.c.l.b16 %v154
    %v744 = vunpack.c.h.b16 %v154
    %v745 = vunpack.c.l.b16 %v155
    %v746 = vunpack.c.h.b16 %v155
    %v747 = vunpack.c.l.b16 %v156
    %v748 = vunpack.c.h.b16 %v156
    %v749 = vunpack.c.l.b16 %v157
    %v750 = vunpack.c.h.b16 %v157
    %v751 = vunpack.c.l.b16 %v158
    %v752 = vunpack.c.h.b16 %v158
    %v753 = vunpack.c.l.b16 %v159
    %v754 = vunpack.c.h.b16 %v159
    %v755 = vunpack.c.l.b16 %v160
    %v756 = vunpack.c.h.b16 %v160
    %v757 = vunpack.c.l.b16 %v161
    %v758 = vunpack.c.h.b16 %v161
    %v759 = vunpack.c.l.b16 %v162
    %v760 = vunpack.c.h.b16 %v162
    %v761 = vunpack.c.l.b16 %v163
    %v762 = vunpack.c.h.b16 %v163
    %v763 = vunpack.c.l.b16 %v164
    %v764 = vunpack.c.h.b16 %v164
    %v765 = vunpack.c.l.b16 %v165
    %v766 = vunpack.c.h.b16 %v165
    %v767 = vunpack.c.l.b16 %v166
    %v768 = vunpack.c.h.b16 %v166
    %v769 = vunpack.c.l.b16 %v167
    %v770 = vunpack.c.h.b16 %v167
    %v771 = vunpack.c.l.b16 %v168
    %v772 = vunpack.c.h.b16 %v168
    %v773 = vunpack.c.l.b16 %v169
    %v774 = vunpack.c.h.b16 %v169
    %v775 = vunpack.c.l.b16 %v170
    %v776 = vunpack.c.h.b16 %v170
    %v777 = vunpack.c.l.b16 %v171
    %v778 = vunpack.c.h.b16 %v171
    %v779 = vunpack.c.l.b16 %v172
    %v780 = vunpack.c.h.b16 %v172
    %v781 = vunpack.c.l.b16 %v173
    %v782 = vunpack.c.h.b16 %v173
    %v783 = vunpack.c.l.b16 %v174
    %v784 = vunpack.c.h.b16 %v174
    %v785 = vunpack.c.l.b16 %v175
    %v786 = vunpack.c.h.b16 %v175
    %v787 = vunpack.c.l.b16 %v176
    %v788 = vunpack.c.h.b16 %v176
    %v789 = vunpack.c.l.b16 %v177
    %v790 = vunpack.c.h.b16 %v177
    %v791 = vunpack.c.l.b16 %v178
    %v792 = vunpack.c.h.b16 %v178
    %v793 = vunpack.c.l.b16 %v179
    %v794 = vunpack.c.h.b16 %v179
    %v795 = vunpack.c.l.b16 %v180
    %v796 = vunpack.c.h.b16 %v180
    %v797 = vunpack.c.l.b16 %v181
    %v798 = vunpack.c.h.b16 %v181
    %v799 = vunpack.c.l.b16 %v182
    %v800 = vunpack.c.h.b16 %v182
    %v801 = vunpack.c.l.b16 %v183
    %v802 = vunpack.c.h.b16 %v183
    %v803 = vunpack.c.l.b16 %v184
    %v804 = vunpack.c.h.b16 %v184
    %v805 = vunpack.c.l.b16 %v185
    %v806 = vunpack.c.h.b16 %v185
    %v807 = vunpack.c.l.b16 %v186
    %v808 = vunpack.c.h.b16 %v186
    %v809 = vunpack.c.l.b16 %v187
    %v810 = vunpack.c.h.b16 %v187
    %v811 = vunpack.c.l.b16 %v188
    %v812 = vunpack.c.h.b16 %v188
    %v813 = vunpack.c.l.b16 %v189
    %v814 = vunpack.c.h.b16 %v189
    %v815 = vunpack.c.l.b16 %v190
    %v816 = vunpack.c.h.b16 %v190
    %v817 = vunpack.c.l.b16 %v191
    %v818 = vunpack.c.h.b16 %v191
    %v819 = vunpack.c.l.b16 %v192
    %v820 = vunpack.c.h.b16 %v192
    %v821 = vunpack.c.l.b16 %v193
    %v822 = vunpack.c.h.b16 %v193
    %v823 = vunpack.c.l.b16 %v194
    %v824 = vunpack.c.h.b16 %v194
    %v825 = vunpack.c.l.b16 %v195
    %v826 = vunpack.c.h.b16 %v195
    %v827 = vunpack.c.l.b16 %v196
    %v828 = vunpack.c.h.b16 %v196
    %v829 = vunpack.c.l.b16 %v197
    %v830 = vunpack.c.h.b16 %v197
    %v831 = vunpack.c.l.b16 %v198
    %v832 = vunpack.c.h.b16 %v198
    %v833 = vunpack.c.l.b16 %v199
    %v834 = vunpack.c.h.b16 %v199
    %v835 = vunpack.c.l.b16 %v200
    %v836 = vunpack.c.h.b16 %v200
    %v837 = vunpack.c.l.b16 %v201
    %v838 = vunpack.c.h.b16 %v201
    %v839 = vunpack.c.l.b16 %v202
    %v840 = vunpack.c.h.b16 %v202
    %v841 = vunpack.c.l.b16 %v203
    %v842 = vunpack.c.h.b16 %v203
    %v843 = vunpack.c.l.b16 %v204
    %v844 = vunpack.c.h.b16 %v204
    %v845 = vunpack.c.l.b16 %v205
    %v846 = vunpack.c.h.b16 %v205
    %v847 = vunpack.c.l.b16 %v206
    %v848 = vunpack.c.h.b16 %v206
    %v849 = vunpack.c.l.b16 %v207
    %v850 = vunpack.c.h.b16 %v207
    %v851 = vunpack.c.l.b16 %v208
    %v852 = vunpack.c.h.b16 %v208
    %v853 = vunpack.c.l.b16 %v209
    %v854 = vunpack.c.h.b16 %v209
    %v855 = vunpack.c.l.b16 %v210
    %v856 = vunpack.c.h.b16 %v210
    %v857 = vunpack.c.l.b16 %v211
    %v858 = vunpack.c.h.b16 %v211
    %v859 = vunpack.c.l.b16 %v212
    %v860 = vunpack.c.h.b16 %v212
    %v861 = vunpack.c.l.b16 %v213
    %v862 = vunpack.c.h.b16 %v213
    %v863 = vunpack.c.l.b16 %v214
    %v864 = vunpack.c.h.b16 %v214
    %v865 = vunpack.c.l.b16 %v215
    %v866 = vunpack.c.h.b16 %v215
    %v867 = vunpack.c.l.b16 %v216
    %v868 = vunpack.c.h.b16 %v216
    %v869 = vunpack.c.l.b16 %v217
    %v870 = vunpack.c.h.b16 %v217
    %v871 = vunpack.c.l.b16 %v218
    %v872 = vunpack.c.h.b16 %v218
    %v873 = vunpack.c.l.b16 %v219
    %v874 = vunpack.c.h.b16 %v219
    %v875 = vunpack.c.l.b16 %v220
    %v876 = vunpack.c.h.b16 %v220
    %v877 = vunpack.c.l.b16 %v221
    %v878 = vunpack.c.h.b16 %v221
    %v879 = vunpack.c.l.b16 %v222
    %v880 = vunpack.c.h.b16 %v222
    %v881 = vunpack.c.l.b16 %v223
    %v882 = vunpack.c.h.b16 %v223
    %v883 = vunpack.c.l.b16 %v224
    %v884 = vunpack.c.h.b16 %v224
    %v885 = vunpack.c.l.b16 %v225
    %v886 = vunpack.c.h.b16 %v225
    %v887 = vunpack.c.l.b16 %v226
    %v888 = vunpack.c.h.b16 %v226
    %v889 = vunpack.c.l.b16 %v227
    %v890 = vunpack.c.h.b16 %v227
    %v891 = vunpack.c.l.b16 %v228
    %v892 = vunpack.c.h.b16 %v228
    %v893 = vunpack.c.l.b16 %v229
    %v894 = vunpack.c.h.b16 %v229
    %v895 = vunpack.c.l.b16 %v230
    %v896 = vunpack.c.h.b16 %v230
    %v897 = vunpack.c.l.b16 %v231
    %v898 = vunpack.c.h.b16 %v231
    %v899 = vunpack.c.l.b16 %v232
    %v900 = vunpack.c.h.b16 %v232
    %v901 = vunpack.c.l.b16 %v233
    %v902 = vunpack.c.h.b16 %v233
    %v903 = vunpack.c.l.b16 %v234
    %v904 = vunpack.c.h.b16 %v234
    %v905 = vunpack.c.l.b16 %v235
    %v906 = vunpack.c.h.b16 %v235
    %v907 = vunpack.c.l.b16 %v236
    %v908 = vunpack.c.h.b16 %v236
    %v909 = vunpack.c.l.b16 %v237
    %v910 = vunpack.c.h.b16 %v237
    %v911 = vunpack.c.l.b16 %v238
    %v912 = vunpack.c.h.b16 %v238
    %v913 = vunpack.c.l.b16 %v239
    %v914 = vunpack.c.h.b16 %v239
    %v915 = vunpack.c.l.b16 %v240
    %v916 = vunpack.c.h.b16 %v240
    %v917 = vunpack.c.l.b16 %v241
    %v918 = vunpack.c.h.b16 %v241
    %v919 = vunpack.c.l.b16 %v242
    %v920 = vunpack.c.h.b16 %v242
    %v921 = vunpack.c.l.b16 %v243
    %v922 = vunpack.c.h.b16 %v243
    %v923 = vunpack.c.l.b16 %v244
    %v924 = vunpack.c.h.b16 %v244
    %v925 = vunpack.c.l.b16 %v245
    %v926 = vunpack.c.h.b16 %v245
    %v927 = vunpack.c.l.b16 %v246
    %v928 = vunpack.c.h.b16 %v246
    %v929 = vunpack.c.l.b16 %v247
    %v930 = vunpack.c.h.b16 %v247
    %v931 = vunpack.c.l.b16 %v248
    %v932 = vunpack.c.h.b16 %v248
    %v933 = vunpack.c.l.b16 %v249
    %v934 = vunpack.c.h.b16 %v249
    %v935 = vunpack.c.l.b16 %v250
    %v936 = vunpack.c.h.b16 %v250
    %v937 = vunpack.c.l.b16 %v251
    %v938 = vunpack.c.h.b16 %v251
    %v939 = vunpack.c.l.b16 %v252
    %v940 = vunpack.c.h.b16 %v252
    %v941 = vunpack.c.l.b16 %v253
    %v942 = vunpack.c.h.b16 %v253
    %v943 = vunpack.c.l.b16 %v254
    %v944 = vunpack.c.h.b16 %v254
    %v945 = vunpack.c.l.b16 %v255
    %v946 = vunpack.c.h.b16 %v255
    %v947 = vunpack.c.l.b16 %v256
    %v948 = vunpack.c.h.b16 %v256
    %v949 = vunpack.c.l.b16 %v257
    %v950 = vunpack.c.h.b16 %v257
    %v951 = vunpack.c.l.b16 %v258
    %v952 = vunpack.c.h.b16 %v258
    %v953 = vunpack.c.l.b16 %v259
    %v954 = vunpack.c.h.b16 %v259
    %v955 = vunpack.c.l.b16 %v260
    %v956 = vunpack.c.h.b16 %v260
    %v957 = vunpack.c.l.b16 %v261
    %v958 = vunpack.c.h.b16 %v261
    %v959 = vunpack.c.l.b16 %v262
    %v960 = vunpack.c.h.b16 %v262
    %v961 = vunpack.c.l.b16 %v263
    %v962 = vunpack.c.h.b16 %v263
    %v963 = vunpack.c.l.b16 %v264
    %v964 = vunpack.c.h.b16 %v264
    %v965 = vunpack.c.l.b16 %v265
    %v966 = vunpack.c.h.b16 %v265
    %v967 = vunpack.c.l.b16 %v266
    %v968 = vunpack.c.h.b16 %v266
    %v969 = vunpack.c.l.b16 %v267
    %v970 = vunpack.c.h.b16 %v267
    %v971 = vunpack.c.l.b16 %v268
    %v972 = vunpack.c.h.b16 %v268
    %v973 = vunpack.c.l.b16 %v269
    %v974 = vunpack.c.h.b16 %v269
    %v975 = vunpack.c.l.b16 %v270
    %v976 = vunpack.c.h.b16 %v270
    %v977 = vunpack.c.l.b16 %v271
    %v978 = vunpack.c.h.b16 %v271
    %v979 = vunpack.c.l.b16 %v272
    %v980 = vunpack.c.h.b16 %v272
    %v981 = vunpack.c.l.b16 %v273
    %v982 = vunpack.c.h.b16 %v273
    %v983 = vunpack.c.l.b16 %v274
    %v984 = vunpack.c.h.b16 %v274
    %v985 = vunpack.c.l.b16 %v275
    %v986 = vunpack.c.h.b16 %v275
    %v987 = vunpack.c.l.b16 %v276
    %v988 = vunpack.c.h.b16 %v276
    %v989 = vunpack.c.l.b16 %v277
    %v990 = vunpack.c.h.b16 %v277
    %v991 = vunpack.c.l.b16 %v278
    %v992 = vunpack.c.h.b16 %v278
    %v993 = vunpack.c.l.b16 %v279
    %v994 = vunpack.c.h.b16 %v279
    %v995 = vunpack.c.l.b16 %v280
    %v996 = vunpack.c.h.b16 %v280
    %v997 = vunpack.c.l.b16 %v281
    %v998 = vunpack.c.h.b16 %v281
    %v999 = vunpack.c.l.b16 %v282
    %v1000 = vunpack.c.h.b16 %v282
    %v1001 = vunpack.c.l.b16 %v283
    %v1002 = vunpack.c.h.b16 %v283
    %v1003 = vunpack.c.l.b16 %v284
    %v1004 = vunpack.c.h.b16 %v284
    %v1005 = vunpack.c.l.b16 %v285
    %v1006 = vunpack.c.h.b16 %v285
    %v1007 = vunpack.c.l.b16 %v286
    %v1008 = vunpack.c.h.b16 %v286
    %v1009 = vunpack.c.l.b16 %v287
    %v1010 = vunpack.c.h.b16 %v287
    %v1011 = vunpack.c.l.b16 %v288
    %v1012 = vunpack.c.h.b16 %v288
    %v1013 = vunpack.c.l.b16 %v289
    %v1014 = vunpack.c.h.b16 %v289
    %v1015 = vunpack.c.l.b16 %v290
    %v1016 = vunpack.c.h.b16 %v290
    %v1017 = vunpack.c.l.b16 %v291
    %v1018 = vunpack.c.h.b16 %v291
    %v1019 = vunpack.c.l.b16 %v292
    %v1020 = vunpack.c.h.b16 %v292
    %v1021 = vunpack.c.l.b16 %v293
    %v1022 = vunpack.c.h.b16 %v293
    %v1023 = vunpack.c.l.b16 %v294
    %v1024 = vunpack.c.h.b16 %v294
    %v1025 = vpack.c.b16 %v581, %v577
    %v1026 = vpack.c.b16 %v582, %v578
    %v1027 = vpack.c.b16 %v583, %v579
    %v1028 = vpack.c.b16 %v584, %v580
    %v1029 = vpack.c.b16 %v589, %v585
    %v1030 = vpack.c.b16 %v590, %v586
    %v1031 = vpack.c.b16 %v591, %v587
    %v1032 = vpack.c.b16 %v592, %v588
    %v1033 = vpack.c.b16 %v597, %v593
    %v1034 = vpack.c.b16 %v598, %v594
    %v1035 = vpack.c.b16 %v599, %v595
    %v1036 = vpack.c.b16 %v600, %v596
    %v1037 = vpack.c.b16 %v605, %v601
    %v1038 = vpack.c.b16 %v606, %v602
    %v1039 = vpack.c.b16 %v607, %v603
    %v1040 = vpack.c.b16 %v608, %v604
    %v1041 = vpack.c.b16 %v613, %v609
    %v1042 = vpack.c.b16 %v614, %v610
    %v1043 = vpack.c.b16 %v615, %v611
    %v1044 = vpack.c.b16 %v616, %v612
    %v1045 = vpack.c.b16 %v621, %v617
    %v1046 = vpack.c.b16 %v622, %v618
    %v1047 = vpack.c.b16 %v623, %v619
    %v1048 = vpack.c.b16 %v624, %v620
    %v1049 = vpack.c.b16 %v629, %v625
    %v1050 = vpack.c.b16 %v630, %v626
    %v1051 = vpack.c.b16 %v631, %v627
    %v1052 = vpack.c.b16 %v632, %v628
    %v1053 = vpack.c.b16 %v637, %v633
    %v1054 = vpack.c.b16 %v638, %v634
    %v1055 = vpack.c.b16 %v639, %v635
    %v1056 = vpack.c.b16 %v640, %v636
    %v1057 = vpack.c.b16 %v645, %v641
    %v1058 = vpack.c.b16 %v646, %v642
    %v1059 = vpack.c.b16 %v647, %v643
    %v1060 = vpack.c.b16 %v648, %v644
    %v1061 = vpack.c.b16 %v653, %v649
    %v1062 = vpack.c.b16 %v654, %v650
    %v1063 = vpack.c.b16 %v655, %v651
    %v1064 = vpack.c.b16 %v656, %v652
    %v1065 = vpack.c.b16 %v661, %v657
    %v1066 = vpack.c.b16 %v662, %v658
    %v1067 = vpack.c.b16 %v663, %v659
    %v1068 = vpack.c.b16 %v664, %v660
    %v1069 = vpack.c.b16 %v669, %v665
    %v1070 = vpack.c.b16 %v670, %v666
    %v1071 = vpack.c.b16 %v671, %v667
    %v1072 = vpack.c.b16 %v672, %v668
    %v1073 = vpack.c.b16 %v677, %v673
    %v1074 = vpack.c.b16 %v678, %v674
    %v1075 = vpack.c.b16 %v679, %v675
    %v1076 = vpack.c.b16 %v680, %v676
    %v1077 = vpack.c.b16 %v685, %v681
    %v1078 = vpack.c.b16 %v686, %v682
    %v1079 = vpack.c.b16 %v687, %v683
    %v1080 = vpack.c.b16 %v688, %v684
    %v1081 = vpack.c.b16 %v693, %v689
    %v1082 = vpack.c.b16 %v694, %v690
    %v1083 = vpack.c.b16 %v695, %v691
    %v1084 = vpack.c.b16 %v696, %v692
    %v1085 = vpack.c.b16 %v701, %v697
    %v1086 = vpack.c.b16 %v702, %v698
    %v1087 = vpack.c.b16 %v703, %v699
    %v1088 = vpack.c.b16 %v704, %v700
    %v1089 = vpack.c.b16 %v709, %v705
    %v1090 = vpack.c.b16 %v710, %v706
    %v1091 = vpack.c.b16 %v711, %v707
    %v1092 = vpack.c.b16 %v712, %v708
    %v1093 = vpack.c.b16 %v717, %v713
    %v1094 = vpack.c.b16 %v718, %v714
    %v1095 = vpack.c.b16 %v719, %v715
    %v1096 = vpack.c.b16 %v720, %v716
    %v1097 = vpack.c.b16 %v725, %v721
    %v1098 = vpack.c.b16 %v726, %v722
    %v1099 = vpack.c.b16 %v727, %v723
    %v1100 = vpack.c.b16 %v728, %v724
    %v1101 = vpack.c.b16 %v733, %v729
    %v1102 = vpack.c.b16 %v734, %v730
    %v1103 = vpack.c.b16 %v735, %v731
    %v1104 = vpack.c.b16 %v736, %v732
    %v1105 = vpack.c.b16 %v741, %v737
    %v1106 = vpack.c.b16 %v742, %v738
    %v1107 = vpack.c.b16 %v743, %v739
    %v1108 = vpack.c.b16 %v744, %v740
    %v1109 = vpack.c.b16 %v749, %v745
    %v1110 = vpack.c.b16 %v750, %v746
    %v1111 = vpack.c.b16 %v751, %v747
    %v1112 = vpack.c.b16 %v752, %v748
    %v1113 = vpack.c.b16 %v757, %v753
    %v1114 = vpack.c.b16 %v758, %v754
    %v1115 = vpack.c.b16 %v759, %v755
    %v1116 = vpack.c.b16 %v760, %v756
    %v1117 = vpack.c.b16 %v765, %v761
    %v1118 = vpack.c.b16 %v766, %v762
    %v1119 = vpack.c.b16 %v767, %v763
    %v1120 = vpack.c.b16 %v768, %v764
    %v1121 = vpack.c.b16 %v773, %v769
    %v1122 = vpack.c.b16 %v774, %v770
    %v1123 = vpack.c.b16 %v775, %v771
    %v1124 = vpack.c.b16 %v776, %v772
    %v1125 = vpack.c.b16 %v781, %v777
    %v1126 = vpack.c.b16 %v782, %v778
    %v1127 = vpack.c.b16 %v783, %v779
    %v1128 = vpack.c.b16 %v784, %v780
    %v1129 = vpack.c.b16 %v789, %v785
    %v1130 = vpack.c.b16 %v790, %v786
    %v1131 = vpack.c.b16 %v791, %v787
    %v1132 = vpack.c.b16 %v792, %v788
    %v1133 = vpack.c.b16 %v797, %v793
    %v1134 = vpack.c.b16 %v798, %v794
    %v1135 = vpack.c.b16 %v799, %v795
    %v1136 = vpack.c.b16 %v800, %v796
    %v1137 = vpack.c.b16 %v805, %v801
    %v1138 = vpack.c.b16 %v806, %v802
    %v1139 = vpack.c.b16 %v807, %v803
    %v1140 = vpack.c.b16 %v808, %v804
    %v1141 = vpack.c.b16 %v813, %v809
    %v1142 = vpack.c.b16 %v814, %v810
    %v1143 = vpack.c.b16 %v815, %v811
    %v1144 = vpack.c.b16 %v816, %v812
    %v1145 = vpack.c.b16 %v821, %v817
    %v1146 = vpack.c.b16 %v822, %v818
    %v1147 = vpack.c.b16 %v823, %v819
    %v1148 = vpack.c.b16 %v824, %v820
    %v1149 = vpack.c.b16 %v829, %v825
    %v1150 = vpack.c.b16 %v830, %v826
    %v1151 = vpack.c.b16 %v831, %v827
    %v1152 = vpack.c.b16 %v832, %v828
    %v1153 = vpack.c.b16 %v837, %v833
    %v1154 = vpack.c.b16 %v838, %v834
    %v1155 = vpack.c.b16 %v839, %v835
    %v1156 = vpack.c.b16 %v840, %v836
    %v1157 = vpack.c.b16 %v845, %v841
    %v1158 = vpack.c.b16 %v846, %v842
    %v1159 = vpack.c.b16 %v847, %v843
    %v1160 = vpack.c.b16 %v848, %v844
    %v1161 = vpack.c.b16 %v853, %v849
    %v1162 = vpack.c.b16 %v854, %v850
    %v1163 = vpack.c.b16 %v855, %v851
    %v1164 = vpack.c.b16 %v856, %v852
    %v1165 = vpack.c.b16 %v861, %v857
    %v1166 = vpack.c.b16 %v862, %v858
    %v1167 = vpack.c.b16 %v863, %v859
    %v1168 = vpack.c.b16 %v864, %v860
    %v1169 = vpack.c.b16 %v869, %v865
    %v1170 = vpack.c.b16 %v870, %v866
    %v1171 = vpack.c.b16 %v871, %v867
    %v1172 = vpack.c.b16 %v872, %v868
    %v1173 = vpack.c.b16 %v877, %v873
    %v1174 = vpack.c.b16 %v878, %v874
    %v1175 = vpack.c.b16 %v879, %v875
    %v1176 = vpack.c.b16 %v880, %v876
    %v1177 = vpack.c.b16 %v885, %v881
    %v1178 = vpack.c.b16 %v886, %v882
    %v1179 = vpack.c.b16 %v887, %v883
    %v1180 = vpack.c.b16 %v888, %v884
    %v1181 = vpack.c.b16 %v893, %v889
    %v1182 = vpack.c.b16 %v894, %v890
    %v1183 = vpack.c.b16 %v895, %v891
    %v1184 = vpack.c.b16 %v896, %v892
    %v1185 = vpack.c.b16 %v901, %v897
    %v1186 = vpack.c.b16 %v902, %v898
    %v1187 = vpack.c.b16 %v903, %v899
    %v1188 = vpack.c.b16 %v904, %v900
    %v1189 = vpack.c.b16 %v909, %v905
    %v1190 = vpack.c.b16 %v910, %v906
    %v1191 = vpack.c.b16 %v911, %v907
    %v1192 = vpack.c.b16 %v912, %v908
    %v1193 = vpack.c.b16 %v917, %v913
    %v1194 = vpack.c.b16 %v918, %v914
    %v1195 = vpack.c.b16 %v919, %v915
    %v1196 = vpack.c.b16 %v920, %v916
    %v1197 = vpack.c.b16 %v925, %v921
    %v1198 = vpack.c.b16 %v926, %v922
    %v1199 = vpack.c.b16 %v927, %v923
    %v1200 = vpack.c.b16 %v928, %v924
    %v1201 = vpack.c.b16 %v933, %v929
    %v1202 = vpack.c.b16 %v934, %v930
    %v1203 = vpack.c.b16 %v935, %v931
    %v1204 = vpack.c.b16 %v936, %v932
    %v1205 = vpack.c.b16 %v941, %v937
    %v1206 = vpack.c.b16 %v942, %v938
    %v1207 = vpack.c.b16 %v943, %v939
    %v1208 = vpack.c.b16 %v944, %v940
    %v1209 = vpack.c.b16 %v949, %v945
    %v1210 = vpack.c.b16 %v950, %v946
    %v1211 = vpack.c.b16 %v951, %v947
    %v1212 = vpack.c.b16 %v952, %v948
    %v1213 = vpack.c.b16 %v957, %v953
    %v1214 = vpack.c.b16 %v958, %v954
    %v1215 = vpack.c.b16 %v959, %v955
    %v1216 = vpack.c.b16 %v960, %v956
    %v1217 = vpack.c.b16 %v965, %v961
    %v1218 = vpack.c.b16 %v966, %v962
    %v1219 = vpack.c.b16 %v967, %v963
    %v1220 = vpack.c.b16 %v968, %v964
    %v1221 = vpack.c.b16 %v973, %v969
    %v1222 = vpack.c.b16 %v974, %v970
    %v1223 = vpack.c.b16 %v975, %v971
    %v1224 = vpack.c.b16 %v976, %v972
    %v1225 = vpack.c.b16 %v981, %v977
    %v1226 = vpack.c.b16 %v982, %v978
    %v1227 = vpack.c.b16 %v983, %v979
    %v1228 = vpack.c.b16 %v984, %v980
    %v1229 = vpack.c.b16 %v989, %v985
    %v1230 = vpack.c.b16 %v990, %v986
    %v1231 = vpack.c.b16 %v991, %v987
    %v1232 = vpack.c.b16 %v992, %v988
    %v1233 = vpack.c.b16 %v997, %v993
    %v1234 = vpack.c.b16 %v998, %v994
    %v1235 = vpack.c.b16 %v999, %v995
    %v1236 = vpack.c.b16 %v1000, %v996
    %v1237 = vpack.c.b16 %v1005, %v1001
    %v1238 = vpack.c.b16 %v1006, %v1002
    %v1239 = vpack.c.b16 %v1007, %v1003
    %v1240 = vpack.c.b16 %v1008, %v1004
    %v1241 = vpack.c.b16 %v1013, %v1009
    %v1242 = vpack.c.b16 %v1014, %v1010
    %v1243 = vpack.c.b16 %v1015, %v1011
    %v1244 = vpack.c.b16 %v1016, %v1012
    %v1245 = vpack.c.b16 %v1021, %v1017
    %v1246 = vpack.c.b16 %v1022, %v1018
    %v1247 = vpack.c.b16 %v1023, %v1019
    %v1248 = vpack.c.b16 %v1024, %v1020
    %1473 = vmatprep.subr.bf16.mxu0 %v1026
    %1474 = vmatpush1.bf16.msra.mxu0 %v1025
    %1475 = vmatprep.subr.bf16.mxu0 %v1030
    %1476 = vmatpush1.bf16.msra.mxu0 %v1029
    %1477 = vmatprep.subr.bf16.mxu0 %v1034
    %1478 = vmatpush1.bf16.msra.mxu0 %v1033
    %1479 = vmatprep.subr.bf16.mxu0 %v1038
    %1480 = vmatpush1.bf16.msra.mxu0 %v1037
    %1481 = vmatprep.subr.bf16.mxu0 %v1042
    %1482 = vmatpush1.bf16.msra.mxu0 %v1041
    %1483 = vmatprep.subr.bf16.mxu0 %v1046
    %1484 = vmatpush1.bf16.msra.mxu0 %v1045
    %1485 = vmatprep.subr.bf16.mxu0 %v1050
    %1486 = vmatpush1.bf16.msra.mxu0 %v1049
    %1487 = vmatprep.subr.bf16.mxu0 %v1054
    %1488 = vmatpush1.bf16.msra.mxu0 %v1053
    %1489 = vmatprep.subr.bf16.mxu0 %v1058
    %1490 = vmatpush1.bf16.msra.mxu0 %v1057
    %1491 = vmatprep.subr.bf16.mxu0 %v1062
    %1492 = vmatpush1.bf16.msra.mxu0 %v1061
    %1493 = vmatprep.subr.bf16.mxu0 %v1066
    %1494 = vmatpush1.bf16.msra.mxu0 %v1065
    %1495 = vmatprep.subr.bf16.mxu0 %v1070
    %1496 = vmatpush1.bf16.msra.mxu0 %v1069
    %1497 = vmatprep.subr.bf16.mxu0 %v1074
    %1498 = vmatpush1.bf16.msra.mxu0 %v1073
    %1499 = vmatprep.subr.bf16.mxu0 %v1078
    %1500 = vmatpush1.bf16.msra.mxu0 %v1077
    %1501 = vmatprep.subr.bf16.mxu0 %v1082
    %1502 = vmatpush1.bf16.msra.mxu0 %v1081
    %1503 = vmatprep.subr.bf16.mxu0 %v1086
    %1504 = vmatpush1.bf16.msra.mxu0 %v1085
    %1505 = vmatprep.mubr.bf16.mxu0 %v340
    %1506 = vmatmul.mubr.bf16.gmra.mrb[0].mxu0 %v339
    %v1507 = vpop.f32.mrb[0].mxu0
    %v1508 = vadd.f32 %v300, %v1507
    %v1509 = vpop.f32.mrb[0].mxu0
    %v1510 = vadd.f32 %v304, %v1509
    %v1511 = vpop.f32.mrb[0].mxu0
    %v1512 = vadd.f32 %v300, %v1511
    %v1513 = vpop.f32.mrb[0].mxu0
    %v1514 = vadd.f32 %v304, %v1513
    %1515 = vdwg.mxu0
    %1516 = vmatprep.subr.bf16.mxu0 %v1090
    %1517 = vmatpush1.bf16.msra.mxu0 %v1089
    %1518 = vmatprep.subr.bf16.mxu0 %v1094
    %1519 = vmatpush1.bf16.msra.mxu0 %v1093
    %1520 = vmatprep.subr.bf16.mxu0 %v1098
    %1521 = vmatpush1.bf16.msra.mxu0 %v1097
    %1522 = vmatprep.subr.bf16.mxu0 %v1102
    %1523 = vmatpush1.bf16.msra.mxu0 %v1101
    %1524 = vmatprep.subr.bf16.mxu0 %v1106
    %1525 = vmatpush1.bf16.msra.mxu0 %v1105
    %1526 = vmatprep.subr.bf16.mxu0 %v1110
    %1527 = vmatpush1.bf16.msra.mxu0 %v1109
    %1528 = vmatprep.subr.bf16.mxu0 %v1114
    %1529 = vmatpush1.bf16.msra.mxu0 %v1113
    %1530 = vmatprep.subr.bf16.mxu0 %v1118
    %1531 = vmatpush1.bf16.msra.mxu0 %v1117
    %1532 = vmatprep.subr.bf16.mxu0 %v1122
    %1533 = vmatpush1.bf16.msra.mxu0 %v1121
    %1534 = vmatprep.subr.bf16.mxu0 %v1126
    %1535 = vmatpush1.bf16.msra.mxu0 %v1125
    %1536 = vmatprep.subr.bf16.mxu0 %v1130
    %1537 = vmatpush1.bf16.msra.mxu0 %v1129
    %1538 = vmatprep.subr.bf16.mxu0 %v1134
    %1539 = vmatpush1.bf16.msra.mxu0 %v1133
    %1540 = vmatprep.subr.bf16.mxu0 %v1138
    %1541 = vmatpush1.bf16.msra.mxu0 %v1137
    %1542 = vmatprep.subr.bf16.mxu0 %v1142
    %1543 = vmatpush1.bf16.msra.mxu0 %v1141
    %1544 = vmatprep.subr.bf16.mxu0 %v1146
    %1545 = vmatpush1.bf16.msra.mxu0 %v1145
    %1546 = vmatprep.subr.bf16.mxu0 %v1150
    %1547 = vmatpush1.bf16.msra.mxu0 %v1149
    %1548 = vmatprep.mubr.bf16.mxu0 %v342
    %1549 = vmatmul.mubr.bf16.gmra.mrb[0].mxu0 %v341
    %v1550 = vpop.f32.mrb[0].mxu0
    %v1551 = vadd.f32 %v1508, %v1550
    %v1552 = vpop.f32.mrb[0].mxu0
    %v1553 = vadd.f32 %v1510, %v1552
    %v1554 = vpop.f32.mrb[0].mxu0
    %v1555 = vadd.f32 %v1512, %v1554
    %v1556 = vpop.f32.mrb[0].mxu0
    %v1557 = vadd.f32 %v1514, %v1556
    %1558 = vdwg.mxu0
    %1559 = vmatprep.subr.bf16.mxu0 %v1154
    %1560 = vmatpush1.bf16.msra.mxu0 %v1153
    %1561 = vmatprep.subr.bf16.mxu0 %v1158
    %1562 = vmatpush1.bf16.msra.mxu0 %v1157
    %1563 = vmatprep.subr.bf16.mxu0 %v1162
    %1564 = vmatpush1.bf16.msra.mxu0 %v1161
    %1565 = vmatprep.subr.bf16.mxu0 %v1166
    %1566 = vmatpush1.bf16.msra.mxu0 %v1165
    %1567 = vmatprep.subr.bf16.mxu0 %v1170
    %1568 = vmatpush1.bf16.msra.mxu0 %v1169
    %1569 = vmatprep.subr.bf16.mxu0 %v1174
    %1570 = vmatpush1.bf16.msra.mxu0 %v1173
    %1571 = vmatprep.subr.bf16.mxu0 %v1178
    %1572 = vmatpush1.bf16.msra.mxu0 %v1177
    %1573 = vmatprep.subr.bf16.mxu0 %v1182
    %1574 = vmatpush1.bf16.msra.mxu0 %v1181
    %1575 = vmatprep.subr.bf16.mxu0 %v1186
    %1576 = vmatpush1.bf16.msra.mxu0 %v1185
    %1577 = vmatprep.subr.bf16.mxu0 %v1190
    %1578 = vmatpush1.bf16.msra.mxu0 %v1189
    %1579 = vmatprep.subr.bf16.mxu0 %v1194
    %1580 = vmatpush1.bf16.msra.mxu0 %v1193
    %1581 = vmatprep.subr.bf16.mxu0 %v1198
    %1582 = vmatpush1.bf16.msra.mxu0 %v1197
    %1583 = vmatprep.subr.bf16.mxu0 %v1202
    %1584 = vmatpush1.bf16.msra.mxu0 %v1201
    %1585 = vmatprep.subr.bf16.mxu0 %v1206
    %1586 = vmatpush1.bf16.msra.mxu0 %v1205
    %1587 = vmatprep.subr.bf16.mxu0 %v1210
    %1588 = vmatpush1.bf16.msra.mxu0 %v1209
    %1589 = vmatprep.subr.bf16.mxu0 %v1214
    %1590 = vmatpush1.bf16.msra.mxu0 %v1213
    %1591 = vmatprep.mubr.bf16.mxu0 %v344
    %1592 = vmatmul.mubr.bf16.gmra.mrb[0].mxu0 %v343
    %v1593 = vpop.f32.mrb[0].mxu0
    %v1594 = vadd.f32 %v1551, %v1593
    %v1595 = vpop.f32.mrb[0].mxu0
    %v1596 = vadd.f32 %v1553, %v1595
    %v1597 = vpop.f32.mrb[0].mxu0
    %v1598 = vadd.f32 %v1555, %v1597
    %v1599 = vpop.f32.mrb[0].mxu0
    %v1600 = vadd.f32 %v1557, %v1599
    %1601 = vdwg.mxu0
    %1602 = vmatprep.subr.bf16.mxu0 %v1218
    %1603 = vmatpush1.bf16.msra.mxu0 %v1217
    %1604 = vmatprep.subr.bf16.mxu0 %v1222
    %1605 = vmatpush1.bf16.msra.mxu0 %v1221
    %1606 = vmatprep.subr.bf16.mxu0 %v1226
    %1607 = vmatpush1.bf16.msra.mxu0 %v1225
    %1608 = vmatprep.subr.bf16.mxu0 %v1230
    %1609 = vmatpush1.bf16.msra.mxu0 %v1229
    %1610 = vmatprep.subr.bf16.mxu0 %v1234
    %1611 = vmatpush1.bf16.msra.mxu0 %v1233
    %1612 = vmatprep.subr.bf16.mxu0 %v1238
    %1613 = vmatpush1.bf16.msra.mxu0 %v1237
    %1614 = vmatprep.subr.bf16.mxu0 %v1242
    %1615 = vmatpush1.bf16.msra.mxu0 %v1241
    %1616 = vmatprep.subr.bf16.mxu0 %v1246
    %1617 = vmatpush1.bf16.msra.mxu0 %v1245
    %1618 = vmatprep.subr.bf16.mxu0 0
    %1619 = vmatpush1.bf16.msra.mxu0 0
    %1620 = vmatprep.subr.bf16.mxu0 0
    %1621 = vmatpush1.bf16.msra.mxu0 0
    %1622 = vmatprep.subr.bf16.mxu0 0
    %1623 = vmatpush1.bf16.msra.mxu0 0
    %1624 = vmatprep.subr.bf16.mxu0 0
    %1625 = vmatpush1.bf16.msra.mxu0 0
    %1626 = vmatprep.subr.bf16.mxu0 0
    %1627 = vmatpush1.bf16.msra.mxu0 0
    %1628 = vmatprep.subr.bf16.mxu0 0
    %1629 = vmatpush1.bf16.msra.mxu0 0
    %1630 = vmatprep.subr.bf16.mxu0 0
    %1631 = vmatpush1.bf16.msra.mxu0 0
    %1632 = vmatprep.subr.bf16.mxu0 0
    %1633 = vmatpush1.bf16.msra.mxu0 0
    %1634 = vmatprep.mubr.bf16.mxu0 0
    %1635 = vmatmul.mubr.bf16.gmra.mrb[0].mxu0 %v345
    %v1636 = vpop.f32.mrb[0].mxu0
    %v1637 = vadd.f32 %v1594, %v1636
    %v1638 = vpop.f32.mrb[0].mxu0
    %v1639 = vadd.f32 %v1596, %v1638
    %v1640 = vpop.f32.mrb[0].mxu0
    %v1641 = vadd.f32 %v1598, %v1640
    %v1642 = vpop.f32.mrb[0].mxu0
    %v1643 = vadd.f32 %v1600, %v1642
    %1644 = vdwg.mxu0
    %1645 = vmatprep.subr.bf16.mxu0 %v1028
    %1646 = vmatpush1.bf16.msra.mxu0 %v1027
    %1647 = vmatprep.subr.bf16.mxu0 %v1032
    %1648 = vmatpush1.bf16.msra.mxu0 %v1031
    %1649 = vmatprep.subr.bf16.mxu0 %v1036
    %1650 = vmatpush1.bf16.msra.mxu0 %v1035
    %1651 = vmatprep.subr.bf16.mxu0 %v1040
    %1652 = vmatpush1.bf16.msra.mxu0 %v1039
    %1653 = vmatprep.subr.bf16.mxu0 %v1044
    %1654 = vmatpush1.bf16.msra.mxu0 %v1043
    %1655 = vmatprep.subr.bf16.mxu0 %v1048
    %1656 = vmatpush1.bf16.msra.mxu0 %v1047
    %1657 = vmatprep.subr.bf16.mxu0 %v1052
    %1658 = vmatpush1.bf16.msra.mxu0 %v1051
    %1659 = vmatprep.subr.bf16.mxu0 %v1056
    %1660 = vmatpush1.bf16.msra.mxu0 %v1055
    %1661 = vmatprep.subr.bf16.mxu0 %v1060
    %1662 = vmatpush1.bf16.msra.mxu0 %v1059
    %1663 = vmatprep.subr.bf16.mxu0 %v1064
    %1664 = vmatpush1.bf16.msra.mxu0 %v1063
    %1665 = vmatprep.subr.bf16.mxu0 %v1068
    %1666 = vmatpush1.bf16.msra.mxu0 %v1067
    %1667 = vmatprep.subr.bf16.mxu0 %v1072
    %1668 = vmatpush1.bf16.msra.mxu0 %v1071
    %1669 = vmatprep.subr.bf16.mxu0 %v1076
    %1670 = vmatpush1.bf16.msra.mxu0 %v1075
    %1671 = vmatprep.subr.bf16.mxu0 %v1080
    %1672 = vmatpush1.bf16.msra.mxu0 %v1079
    %1673 = vmatprep.subr.bf16.mxu0 %v1084
    %1674 = vmatpush1.bf16.msra.mxu0 %v1083
    %1675 = vmatprep.subr.bf16.mxu0 %v1088
    %1676 = vmatpush1.bf16.msra.mxu0 %v1087
    %1677 = vmatprep.mubr.bf16.mxu0 %v340
    %1678 = vmatmul.mubr.bf16.gmra.mrb[0].mxu0 %v339
    %v1679 = vpop.f32.mrb[0].mxu0
    %v1680 = vadd.f32 %v308, %v1679
    %v1681 = vpop.f32.mrb[0].mxu0
    %v1682 = vadd.f32 %v312, %v1681
    %v1683 = vpop.f32.mrb[0].mxu0
    %v1684 = vadd.f32 %v308, %v1683
    %v1685 = vpop.f32.mrb[0].mxu0
    %v1686 = vadd.f32 %v312, %v1685
    %1687 = vdwg.mxu0
    %1688 = vmatprep.subr.bf16.mxu0 %v1092
    %1689 = vmatpush1.bf16.msra.mxu0 %v1091
    %1690 = vmatprep.subr.bf16.mxu0 %v1096
    %1691 = vmatpush1.bf16.msra.mxu0 %v1095
    %1692 = vmatprep.subr.bf16.mxu0 %v1100
    %1693 = vmatpush1.bf16.msra.mxu0 %v1099
    %1694 = vmatprep.subr.bf16.mxu0 %v1104
    %1695 = vmatpush1.bf16.msra.mxu0 %v1103
    %1696 = vmatprep.subr.bf16.mxu0 %v1108
    %1697 = vmatpush1.bf16.msra.mxu0 %v1107
    %1698 = vmatprep.subr.bf16.mxu0 %v1112
    %1699 = vmatpush1.bf16.msra.mxu0 %v1111
    %1700 = vmatprep.subr.bf16.mxu0 %v1116
    %1701 = vmatpush1.bf16.msra.mxu0 %v1115
    %1702 = vmatprep.subr.bf16.mxu0 %v1120
    %1703 = vmatpush1.bf16.msra.mxu0 %v1119
    %1704 = vmatprep.subr.bf16.mxu0 %v1124
    %1705 = vmatpush1.bf16.msra.mxu0 %v1123
    %1706 = vmatprep.subr.bf16.mxu0 %v1128
    %1707 = vmatpush1.bf16.msra.mxu0 %v1127
    %1708 = vmatprep.subr.bf16.mxu0 %v1132
    %1709 = vmatpush1.bf16.msra.mxu0 %v1131
    %1710 = vmatprep.subr.bf16.mxu0 %v1136
    %1711 = vmatpush1.bf16.msra.mxu0 %v1135
    %1712 = vmatprep.subr.bf16.mxu0 %v1140
    %1713 = vmatpush1.bf16.msra.mxu0 %v1139
    %1714 = vmatprep.subr.bf16.mxu0 %v1144
    %1715 = vmatpush1.bf16.msra.mxu0 %v1143
    %1716 = vmatprep.subr.bf16.mxu0 %v1148
    %1717 = vmatpush1.bf16.msra.mxu0 %v1147
    %1718 = vmatprep.subr.bf16.mxu0 %v1152
    %1719 = vmatpush1.bf16.msra.mxu0 %v1151
    %1720 = vmatprep.mubr.bf16.mxu0 %v342
    %1721 = vmatmul.mubr.bf16.gmra.mrb[0].mxu0 %v341
    %v1722 = vpop.f32.mrb[0].mxu0
    %v1723 = vadd.f32 %v1680, %v1722
    %v1724 = vpop.f32.mrb[0].mxu0
    %v1725 = vadd.f32 %v1682, %v1724
    %v1726 = vpop.f32.mrb[0].mxu0
    %v1727 = vadd.f32 %v1684, %v1726
    %v1728 = vpop.f32.mrb[0].mxu0
    %v1729 = vadd.f32 %v1686, %v1728
    %1730 = vdwg.mxu0
    %1731 = vmatprep.subr.bf16.mxu0 %v1156
    %1732 = vmatpush1.bf16.msra.mxu0 %v1155
    %1733 = vmatprep.subr.bf16.mxu0 %v1160
    %1734 = vmatpush1.bf16.msra.mxu0 %v1159
    %1735 = vmatprep.subr.bf16.mxu0 %v1164
    %1736 = vmatpush1.bf16.msra.mxu0 %v1163
    %1737 = vmatprep.subr.bf16.mxu0 %v1168
    %1738 = vmatpush1.bf16.msra.mxu0 %v1167
    %1739 = vmatprep.subr.bf16.mxu0 %v1172
    %1740 = vmatpush1.bf16.msra.mxu0 %v1171
    %1741 = vmatprep.subr.bf16.mxu0 %v1176
    %1742 = vmatpush1.bf16.msra.mxu0 %v1175
    %1743 = vmatprep.subr.bf16.mxu0 %v1180
    %1744 = vmatpush1.bf16.msra.mxu0 %v1179
    %1745 = vmatprep.subr.bf16.mxu0 %v1184
    %1746 = vmatpush1.bf16.msra.mxu0 %v1183
    %1747 = vmatprep.subr.bf16.mxu0 %v1188
    %1748 = vmatpush1.bf16.msra.mxu0 %v1187
    %1749 = vmatprep.subr.bf16.mxu0 %v1192
    %1750 = vmatpush1.bf16.msra.mxu0 %v1191
    %1751 = vmatprep.subr.bf16.mxu0 %v1196
    %1752 = vmatpush1.bf16.msra.mxu0 %v1195
    %1753 = vmatprep.subr.bf16.mxu0 %v1200
    %1754 = vmatpush1.bf16.msra.mxu0 %v1199
    %1755 = vmatprep.subr.bf16.mxu0 %v1204
    %1756 = vmatpush1.bf16.msra.mxu0 %v1203
    %1757 = vmatprep.subr.bf16.mxu0 %v1208
    %1758 = vmatpush1.bf16.msra.mxu0 %v1207
    %1759 = vmatprep.subr.bf16.mxu0 %v1212
    %1760 = vmatpush1.bf16.msra.mxu0 %v1211
    %1761 = vmatprep.subr.bf16.mxu0 %v1216
    %1762 = vmatpush1.bf16.msra.mxu0 %v1215
    %1763 = vmatprep.mubr.bf16.mxu0 %v344
    %1764 = vmatmul.mubr.bf16.gmra.mrb[0].mxu0 %v343
    %v1765 = vpop.f32.mrb[0].mxu0
    %v1766 = vadd.f32 %v1723, %v1765
    %v1767 = vpop.f32.mrb[0].mxu0
    %v1768 = vadd.f32 %v1725, %v1767
    %v1769 = vpop.f32.mrb[0].mxu0
    %v1770 = vadd.f32 %v1727, %v1769
    %v1771 = vpop.f32.mrb[0].mxu0
    %v1772 = vadd.f32 %v1729, %v1771
    %1773 = vdwg.mxu0
    %1774 = vmatprep.subr.bf16.mxu0 %v1220
    %1775 = vmatpush1.bf16.msra.mxu0 %v1219
    %1776 = vmatprep.subr.bf16.mxu0 %v1224
    %1777 = vmatpush1.bf16.msra.mxu0 %v1223
    %1778 = vmatprep.subr.bf16.mxu0 %v1228
    %1779 = vmatpush1.bf16.msra.mxu0 %v1227
    %1780 = vmatprep.subr.bf16.mxu0 %v1232
    %1781 = vmatpush1.bf16.msra.mxu0 %v1231
    %1782 = vmatprep.subr.bf16.mxu0 %v1236
    %1783 = vmatpush1.bf16.msra.mxu0 %v1235
    %1784 = vmatprep.subr.bf16.mxu0 %v1240
    %1785 = vmatpush1.bf16.msra.mxu0 %v1239
    %1786 = vmatprep.subr.bf16.mxu0 %v1244
    %1787 = vmatpush1.bf16.msra.mxu0 %v1243
    %1788 = vmatprep.subr.bf16.mxu0 %v1248
    %1789 = vmatpush1.bf16.msra.mxu0 %v1247
    %1790 = vmatprep.subr.bf16.mxu0 0
    %1791 = vmatpush1.bf16.msra.mxu0 0
    %1792 = vmatprep.subr.bf16.mxu0 0
    %1793 = vmatpush1.bf16.msra.mxu0 0
    %1794 = vmatprep.subr.bf16.mxu0 0
    %1795 = vmatpush1.bf16.msra.mxu0 0
    %1796 = vmatprep.subr.bf16.mxu0 0
    %1797 = vmatpush1.bf16.msra.mxu0 0
    %1798 = vmatprep.subr.bf16.mxu0 0
    %1799 = vmatpush1.bf16.msra.mxu0 0
    %1800 = vmatprep.subr.bf16.mxu0 0
    %1801 = vmatpush1.bf16.msra.mxu0 0
    %1802 = vmatprep.subr.bf16.mxu0 0
    %1803 = vmatpush1.bf16.msra.mxu0 0
    %1804 = vmatprep.subr.bf16.mxu0 0
    %1805 = vmatpush1.bf16.msra.mxu0 0
    %1806 = vmatprep.mubr.bf16.mxu0 0
    %1807 = vmatmul.mubr.bf16.gmra.mrb[0].mxu0 %v345
    %v1808 = vpop.f32.mrb[0].mxu0
    %v1809 = vadd.f32 %v1766, %v1808
    %v1810 = vpop.f32.mrb[0].mxu0
    %v1811 = vadd.f32 %v1768, %v1810
    %v1812 = vpop.f32.mrb[0].mxu0
    %v1813 = vadd.f32 %v1770, %v1812
    %v1814 = vpop.f32.mrb[0].mxu0
    %v1815 = vadd.f32 %v1772, %v1814
    %1816 = vdwg.mxu0
    %v1817 = vmax.f32 %v1637, 0.0
    %v1818 = vmax.f32 %v1639, 0.0
    %v1819 = vmax.f32 %v1809, 0.0
    %v1820 = vmax.f32 %v1811, 0.0
    %v1821 = vmax.f32 %v1641, 0.0
    %v1822 = vmax.f32 %v1643, 0.0
    %v1823 = vmax.f32 %v1813, 0.0
    %v1824 = vmax.f32 %v1815, 0.0
    %v1825 = vpack.c.bf16 %v1821, %v1817
    %v1826 = vpack.c.bf16 %v1822, %v1818
    %v1827 = vpack.c.bf16 %v1823, %v1819
    %v1828 = vpack.c.bf16 %v1824, %v1820
    %v1829 = vld [vmem:[#allocation7] sm:$0xf]
    %v1830 = vld [vmem:[#allocation7 + $0x4] sm:$0xf]
    %v1831 = vld [vmem:[#allocation7 + $0x8] sm:$0xf]
    %v1832 = vld [vmem:[#allocation7 + $0xc] sm:$0xf]
    %v1833 = vld [vmem:[#allocation7 + $0x10] sm:$0xf]
    %v1834 = vld [vmem:[#allocation7 + $0x14] sm:$0xf]
    %v1835 = vld [vmem:[#allocation7 + $0x18] sm:$0xf]
    %v1836 = vld [vmem:[#allocation7 + $0x1c] sm:$0xf]
    %v1837 = vld [vmem:[#allocation7 + $0x20] sm:$0xf]
    %v1838 = vld [vmem:[#allocation7 + $0x24] sm:$0xf]
    %v1839 = vld [vmem:[#allocation7 + $0x28] sm:$0xf]
    %v1840 = vld [vmem:[#allocation7 + $0x2c] sm:$0xf]
    %v1841 = vld [vmem:[#allocation7 + $0x30] sm:$0xf]
    %v1842 = vld [vmem:[#allocation7 + $0x34] sm:$0xf]
    %v1843 = vld [vmem:[#allocation7 + $0x38] sm:$0xf]
    %v1844 = vld [vmem:[#allocation7 + $0x3c] sm:$0xf]
    %v1845 = vld [vmem:[#allocation7 + $0x40] sm:$0xf]
    %v1846 = vld [vmem:[#allocation7 + $0x44] sm:$0xf]
    %v1847 = vld [vmem:[#allocation7 + $0x48] sm:$0xf]
    %v1848 = vld [vmem:[#allocation7 + $0x4c] sm:$0xf]
    %v1849 = vld [vmem:[#allocation7 + $0x50] sm:$0xf]
    %v1850 = vld [vmem:[#allocation7 + $0x54] sm:$0xf]
    %v1851 = vld [vmem:[#allocation7 + $0x58] sm:$0xf]
    %v1852 = vld [vmem:[#allocation7 + $0x5c] sm:$0xf]
    %v1853 = vld [vmem:[#allocation7 + $0x60] sm:$0xf]
    %v1854 = vld [vmem:[#allocation7 + $0x64] sm:$0xf]
    %v1855 = vld [vmem:[#allocation7 + $0x68] sm:$0xf]
    %v1856 = vld [vmem:[#allocation7 + $0x6c] sm:$0xf]
    %v1857 = vld [vmem:[#allocation7 + $0x70] sm:$0xf]
    %v1858 = vld [vmem:[#allocation7 + $0x74] sm:$0xf]
    %v1859 = vld [vmem:[#allocation7 + $0x78] sm:$0xf]
    %v1860 = vld [vmem:[#allocation7 + $0x7c] sm:$0xf]
    %v1861 = vld [vmem:[#allocation7 + $0x80] sm:$0xf]
    %v1862 = vld [vmem:[#allocation7 + $0x84] sm:$0xf]
    %v1863 = vld [vmem:[#allocation7 + $0x88] sm:$0xf]
    %v1864 = vld [vmem:[#allocation7 + $0x8c] sm:$0xf]
    %v1865 = vld [vmem:[#allocation7 + $0x90] sm:$0xf]
    %v1866 = vld [vmem:[#allocation7 + $0x94] sm:$0xf]
    %v1867 = vld [vmem:[#allocation7 + $0x98] sm:$0xf]
    %v1868 = vld [vmem:[#allocation7 + $0x9c] sm:$0xf]
    %v1869 = vld [vmem:[#allocation7 + $0xa0] sm:$0xf]
    %v1870 = vld [vmem:[#allocation7 + $0xa4] sm:$0xf]
    %v1871 = vld [vmem:[#allocation7 + $0xa8] sm:$0xf]
    %v1872 = vld [vmem:[#allocation7 + $0xac] sm:$0xf]
    %v1873 = vld [vmem:[#allocation7 + $0xb0] sm:$0xf]
    %v1874 = vld [vmem:[#allocation7 + $0xb4] sm:$0xf]
    %v1875 = vld [vmem:[#allocation7 + $0xb8] sm:$0xf]
    %v1876 = vld [vmem:[#allocation7 + $0xbc] sm:$0xf]
    %v1877 = vld [vmem:[#allocation7 + $0xc0] sm:$0xf]
    %v1878 = vld [vmem:[#allocation7 + $0xc4] sm:$0xf]
    %v1879 = vld [vmem:[#allocation7 + $0xc8] sm:$0xf]
    %v1880 = vld [vmem:[#allocation7 + $0xcc] sm:$0xf]
    %v1881 = vld [vmem:[#allocation7 + $0xd0] sm:$0xf]
    %v1882 = vld [vmem:[#allocation7 + $0xd4] sm:$0xf]
    %v1883 = vld [vmem:[#allocation7 + $0xd8] sm:$0xf]
    %v1884 = vld [vmem:[#allocation7 + $0xdc] sm:$0xf]
    %v1885 = vld [vmem:[#allocation7 + $0xe0] sm:$0xf]
    %v1886 = vld [vmem:[#allocation7 + $0xe4] sm:$0xf]
    %v1887 = vld [vmem:[#allocation7 + $0xe8] sm:$0xf]
    %v1888 = vld [vmem:[#allocation7 + $0xec] sm:$0xf]
    %v1889 = vld [vmem:[#allocation7 + $0xf0] sm:$0xf]
    %v1890 = vld [vmem:[#allocation7 + $0xf4] sm:$0xf]
    %v1891 = vld [vmem:[#allocation7 + $0xf8] sm:$0xf]
    %v1892 = vld [vmem:[#allocation7 + $0xfc] sm:$0xf]
    %v1893 = vld [vmem:[%s4] sm:$0x1]
    %v1895 = vlaneseq
    %v1896 = vshrl.u32 %v1895, 7
    %v1897 = vsub.s32 0, %v1896
    %v1898 = vrot.slane %v1893, %v1897
    %v1964 = vunpack.c.l.b16 %v1829
    %v1965 = vunpack.c.l.b16 %v1830
    %v1966 = vunpack.c.l.b16 %v1831
    %v1967 = vunpack.c.l.b16 %v1832
    %v1968 = vunpack.c.l.b16 %v1833
    %v1969 = vunpack.c.l.b16 %v1834
    %v1970 = vunpack.c.l.b16 %v1835
    %v1971 = vunpack.c.l.b16 %v1836
    %v1972 = vunpack.c.l.b16 %v1837
    %v1973 = vunpack.c.l.b16 %v1838
    %v1974 = vunpack.c.l.b16 %v1839
    %v1975 = vunpack.c.l.b16 %v1840
    %v1976 = vunpack.c.l.b16 %v1841
    %v1977 = vunpack.c.l.b16 %v1842
    %v1978 = vunpack.c.l.b16 %v1843
    %v1979 = vunpack.c.l.b16 %v1844
    %v1980 = vunpack.c.l.b16 %v1845
    %v1981 = vunpack.c.l.b16 %v1846
    %v1982 = vunpack.c.l.b16 %v1847
    %v1983 = vunpack.c.l.b16 %v1848
    %v1984 = vunpack.c.l.b16 %v1849
    %v1985 = vunpack.c.l.b16 %v1850
    %v1986 = vunpack.c.l.b16 %v1851
    %v1987 = vunpack.c.l.b16 %v1852
    %v1988 = vunpack.c.l.b16 %v1853
    %v1989 = vunpack.c.l.b16 %v1854
    %v1990 = vunpack.c.l.b16 %v1855
    %v1991 = vunpack.c.l.b16 %v1856
    %v1992 = vunpack.c.l.b16 %v1857
    %v1993 = vunpack.c.l.b16 %v1858
    %v1994 = vunpack.c.l.b16 %v1859
    %v1995 = vunpack.c.l.b16 %v1860
    %v1996 = vunpack.c.l.b16 %v1861
    %v1997 = vunpack.c.l.b16 %v1862
    %v1998 = vunpack.c.l.b16 %v1863
    %v1999 = vunpack.c.l.b16 %v1864
    %v2000 = vunpack.c.l.b16 %v1865
    %v2001 = vunpack.c.l.b16 %v1866
    %v2002 = vunpack.c.l.b16 %v1867
    %v2003 = vunpack.c.l.b16 %v1868
    %v2004 = vunpack.c.l.b16 %v1869
    %v2005 = vunpack.c.l.b16 %v1870
    %v2006 = vunpack.c.l.b16 %v1871
    %v2007 = vunpack.c.l.b16 %v1872
    %v2008 = vunpack.c.l.b16 %v1873
    %v2009 = vunpack.c.l.b16 %v1874
    %v2010 = vunpack.c.l.b16 %v1875
    %v2011 = vunpack.c.l.b16 %v1876
    %v2012 = vunpack.c.l.b16 %v1877
    %v2013 = vunpack.c.l.b16 %v1878
    %v2014 = vunpack.c.l.b16 %v1879
    %v2015 = vunpack.c.l.b16 %v1880
    %v2016 = vunpack.c.l.b16 %v1881
    %v2017 = vunpack.c.l.b16 %v1882
    %v2018 = vunpack.c.l.b16 %v1883
    %v2019 = vunpack.c.l.b16 %v1884
    %v2020 = vunpack.c.l.b16 %v1885
    %v2021 = vunpack.c.l.b16 %v1886
    %v2022 = vunpack.c.l.b16 %v1887
    %v2023 = vunpack.c.l.b16 %v1888
    %v2024 = vunpack.c.l.b16 %v1889
    %v2025 = vunpack.c.l.b16 %v1890
    %v2026 = vunpack.c.l.b16 %v1891
    %v2027 = vunpack.c.l.b16 %v1892
    %v2028 = vpack.c.b16 %v1965, %v1964
    %v2029 = vpack.c.b16 %v1967, %v1966
    %v2030 = vpack.c.b16 %v1969, %v1968
    %v2031 = vpack.c.b16 %v1971, %v1970
    %v2032 = vpack.c.b16 %v1973, %v1972
    %v2033 = vpack.c.b16 %v1975, %v1974
    %v2034 = vpack.c.b16 %v1977, %v1976
    %v2035 = vpack.c.b16 %v1979, %v1978
    %v2036 = vpack.c.b16 %v1981, %v1980
    %v2037 = vpack.c.b16 %v1983, %v1982
    %v2038 = vpack.c.b16 %v1985, %v1984
    %v2039 = vpack.c.b16 %v1987, %v1986
    %v2040 = vpack.c.b16 %v1989, %v1988
    %v2041 = vpack.c.b16 %v1991, %v1990
    %v2042 = vpack.c.b16 %v1993, %v1992
    %v2043 = vpack.c.b16 %v1995, %v1994
    %v2044 = vpack.c.b16 %v1997, %v1996
    %v2045 = vpack.c.b16 %v1999, %v1998
    %v2046 = vpack.c.b16 %v2001, %v2000
    %v2047 = vpack.c.b16 %v2003, %v2002
    %v2048 = vpack.c.b16 %v2005, %v2004
    %v2049 = vpack.c.b16 %v2007, %v2006
    %v2050 = vpack.c.b16 %v2009, %v2008
    %v2051 = vpack.c.b16 %v2011, %v2010
    %v2052 = vpack.c.b16 %v2013, %v2012
    %v2053 = vpack.c.b16 %v2015, %v2014
    %v2054 = vpack.c.b16 %v2017, %v2016
    %v2055 = vpack.c.b16 %v2019, %v2018
    %v2056 = vpack.c.b16 %v2021, %v2020
    %v2057 = vpack.c.b16 %v2023, %v2022
    %v2058 = vpack.c.b16 %v2025, %v2024
    %v2059 = vpack.c.b16 %v2027, %v2026
    %2092 = vmatprep.subr.bf16.mxu0 0
    %2093 = vmatpush1.bf16.msra.mxu0 %v2028
    %2094 = vmatprep.subr.bf16.mxu0 0
    %2095 = vmatpush1.bf16.msra.mxu0 %v2029
    %2096 = vmatprep.subr.bf16.mxu0 0
    %2097 = vmatpush1.bf16.msra.mxu0 %v2030
    %2098 = vmatprep.subr.bf16.mxu0 0
    %2099 = vmatpush1.bf16.msra.mxu0 %v2031
    %2100 = vmatprep.subr.bf16.mxu0 0
    %2101 = vmatpush1.bf16.msra.mxu0 %v2032
    %2102 = vmatprep.subr.bf16.mxu0 0
    %2103 = vmatpush1.bf16.msra.mxu0 %v2033
    %2104 = vmatprep.subr.bf16.mxu0 0
    %2105 = vmatpush1.bf16.msra.mxu0 %v2034
    %2106 = vmatprep.subr.bf16.mxu0 0
    %2107 = vmatpush1.bf16.msra.mxu0 %v2035
    %2108 = vmatprep.subr.bf16.mxu0 0
    %2109 = vmatpush1.bf16.msra.mxu0 %v2036
    %2110 = vmatprep.subr.bf16.mxu0 0
    %2111 = vmatpush1.bf16.msra.mxu0 %v2037
    %2112 = vmatprep.subr.bf16.mxu0 0
    %2113 = vmatpush1.bf16.msra.mxu0 %v2038
    %2114 = vmatprep.subr.bf16.mxu0 0
    %2115 = vmatpush1.bf16.msra.mxu0 %v2039
    %2116 = vmatprep.subr.bf16.mxu0 0
    %2117 = vmatpush1.bf16.msra.mxu0 %v2040
    %2118 = vmatprep.subr.bf16.mxu0 0
    %2119 = vmatpush1.bf16.msra.mxu0 %v2041
    %2120 = vmatprep.subr.bf16.mxu0 0
    %2121 = vmatpush1.bf16.msra.mxu0 %v2042
    %2122 = vmatprep.subr.bf16.mxu0 0
    %2123 = vmatpush1.bf16.msra.mxu0 %v2043
    %2124 = vmatprep.mubr.bf16.mxu0 %v1826
    %2125 = vmatmul.mubr.bf16.gmra.mrb[0].mxu0 %v1825
    %v2126 = vpop.f32.mrb[0].mxu0
    %v2127 = vadd.f32 %v1898, %v2126
    %v2128 = vpop.f32.mrb[0].mxu0
    %v2129 = vpop.f32.mrb[0].mxu0
    %v2130 = vadd.f32 %v1898, %v2129
    %v2131 = vpop.f32.mrb[0].mxu0
    %2132 = vdwg.mxu0
    %2133 = vmatprep.subr.bf16.mxu0 0
    %2134 = vmatpush1.bf16.msra.mxu0 %v2044
    %2135 = vmatprep.subr.bf16.mxu0 0
    %2136 = vmatpush1.bf16.msra.mxu0 %v2045
    %2137 = vmatprep.subr.bf16.mxu0 0
    %2138 = vmatpush1.bf16.msra.mxu0 %v2046
    %2139 = vmatprep.subr.bf16.mxu0 0
    %2140 = vmatpush1.bf16.msra.mxu0 %v2047
    %2141 = vmatprep.subr.bf16.mxu0 0
    %2142 = vmatpush1.bf16.msra.mxu0 %v2048
    %2143 = vmatprep.subr.bf16.mxu0 0
    %2144 = vmatpush1.bf16.msra.mxu0 %v2049
    %2145 = vmatprep.subr.bf16.mxu0 0
    %2146 = vmatpush1.bf16.msra.mxu0 %v2050
    %2147 = vmatprep.subr.bf16.mxu0 0
    %2148 = vmatpush1.bf16.msra.mxu0 %v2051
    %2149 = vmatprep.subr.bf16.mxu0 0
    %2150 = vmatpush1.bf16.msra.mxu0 %v2052
    %2151 = vmatprep.subr.bf16.mxu0 0
    %2152 = vmatpush1.bf16.msra.mxu0 %v2053
    %2153 = vmatprep.subr.bf16.mxu0 0
    %2154 = vmatpush1.bf16.msra.mxu0 %v2054
    %2155 = vmatprep.subr.bf16.mxu0 0
    %2156 = vmatpush1.bf16.msra.mxu0 %v2055
    %2157 = vmatprep.subr.bf16.mxu0 0
    %2158 = vmatpush1.bf16.msra.mxu0 %v2056
    %2159 = vmatprep.subr.bf16.mxu0 0
    %2160 = vmatpush1.bf16.msra.mxu0 %v2057
    %2161 = vmatprep.subr.bf16.mxu0 0
    %2162 = vmatpush1.bf16.msra.mxu0 %v2058
    %2163 = vmatprep.subr.bf16.mxu0 0
    %2164 = vmatpush1.bf16.msra.mxu0 %v2059
    %2165 = vmatprep.mubr.bf16.mxu0 %v1828
    %2166 = vmatmul.mubr.bf16.gmra.mrb[0].mxu0 %v1827
    %v2167 = vpop.f32.mrb[0].mxu0
    %v2168 = vadd.f32 %v2127, %v2167
    %v2169 = vpop.f32.mrb[0].mxu0
    %v2170 = vpop.f32.mrb[0].mxu0
    %v2171 = vadd.f32 %v2130, %v2170
    %v2172 = vpop.f32.mrb[0].mxu0
    %2173 = vdwg.mxu0
    %2174 = vmax.xlane.f32.xlu0 %v2168
    %v2175 = vpop.xlane.xlu0 %2174
    %2176 = vmax.xlane.f32.xlu0 %v2171
    %v2177 = vpop.xlane.xlu0 %2176
    %v2178 = vsub.f32 %v2168, %v2175
    %v2179 = vsub.f32 %v2171, %v2177
    %v2180 = vmul.f32 %v2178, 1.442695
    %v2181 = vpow.pop %v2180
    %v2182 = vmul.f32 %v2179, 1.442695
    %v2183 = vpow.pop %v2182
    %2184 = vadd.xlane.f32.xlu0 %v2181
    %v2185 = vpop.xlane.xlu0 %2184
    %2186 = vadd.xlane.f32.xlu0 %v2183
    %v2187 = vpop.xlane.xlu0 %2186
    %v2188 = vlog2.pop %v2185
    %v2189 = vmul.f32 %v2188, 0.6931472
    %v2190 = vlog2.pop %v2187
    %v2191 = vmul.f32 %v2190, 0.6931472
    %v2192 = vsub.f32 %v2178, %v2189
    %v2193 = vsub.f32 %v2179, %v2191
    %2194 = vst [vmem:[#allocation8] sm:$0xff] %v2192
    %2195 = vst [vmem:[#allocation8 + $0x8] sm:$0xff] %v2193
    // Predicated region
    $region34: #{tpu_custom_call.1} parent=1 // pred_check
      _
    $region35: #{tpu_custom_call.1} parent=1 // pred_check_branch
      %2197 = sbr.rel (0) target = $region37
    $region36: #{tpu_custom_call.1} parent=1 // pred_region
      %s2199 = ssub.s32 256, 256
      %2200 = vsyncadd [#allocation4], %s2199
      %s2201 = sshll.u32 [#allocation8], 4
      %s2202 = int_to_ptr.vmem [resolvable:$true] %s2201
      %2207 = dma.vmem_to_hbm [thread:$0]  %s2202, 256, %s5, [#allocation4], 128, 128, 8
    $region37: #{tpu_custom_call.1} parent=1 // pred_fallthru
      _
    // Predicated region
    $region38: #{tpu_custom_call.1} parent=1 // pred_check
      _
    $region39: #{tpu_custom_call.1} parent=1 // pred_check_branch
      %2209 = sbr.rel (0) target = $region41
    $region40: #{tpu_custom_call.1} parent=1 // pred_region
      %2210 = dma.done [#allocation4], 256
    $region41: #{tpu_custom_call.1} parent=1 // pred_fallthru
      _
    %2211 = vsyncpa [#allocation3], 1
    %2212 = vsyncpa [#allocation6], 1
    %2213 = vsyncpa [#allocation4], 1

</llo_original>
